<compile_context>
chip_gen: v7x
topology: tpu7x:2x2x1
jax: 0.10.0
libtpu: 0.0.40
codegen_flags: <defaults>
</compile_context>

<pallas_src>
import functools

import jax
import jax.numpy as jnp
from jax import lax
from jax.experimental import pallas as pl
from jax.experimental.pallas import tpu as pltpu

_LANE = 128


def _round_up(x, m):
    return (x + m - 1) // m * m


def _pad_to(a, shape):
    return jnp.pad(a, [(0, s - d) for d, s in zip(a.shape, shape)])


# ----------------------------------------------------------------------------
# Fused bottleneck kernel: one grid step per batch element.
# ----------------------------------------------------------------------------
def _bottleneck_kernel(x_ref, w1_ref, b1_ref, w3_ref, b2_ref, w5_ref, b3_ref,
                       sew1_ref, sew2_ref, scw_ref, scb_ref, o_ref,
                       ypad_ref, *, H, W):
    HW = H * W
    Cp = w1_ref.shape[1]

    x = x_ref[0]                                              # (HW, Cin_p) bf16

    # -- stage 1: 1x1 conv (BN scale folded into W) + bias + ReLU -------------
    y1 = jnp.dot(x, w1_ref[...], preferred_element_type=jnp.float32)
    y1 = jnp.maximum(y1 + b1_ref[...], 0.0)

    # -- stage 2: 3x3 conv (pad=1) as 9 accumulated matmuls -------------------
    # Write y1 into the interior of a zero-haloed VMEM scratch tile; the halo
    # provides the conv's zero padding. No HBM im2col is materialized.
    ypad_ref[...] = jnp.zeros_like(ypad_ref)
    y1_q = y1.astype(jnp.bfloat16).astype(jnp.float32)        # bf16-rounded operand
    ypad_ref[pl.ds(1, H), pl.ds(1, W), :] = y1_q.reshape(H, W, Cp)

    # Three horizontally-shifted full-height views (sublane shifts hoisted).
    shifted = [ypad_ref[:, pl.ds(kw, W), :].astype(jnp.bfloat16)
               for kw in range(3)]                            # 3 x (H+2, W, Cp)
    acc = jnp.zeros((HW, Cp), jnp.float32)
    for kh in range(3):
        for kw in range(3):
            tap = shifted[kw][kh:kh + H].reshape(HW, Cp)
            acc = acc + jnp.dot(tap, w3_ref[kh * 3 + kw],
                                preferred_element_type=jnp.float32)
    y2 = jnp.maximum(acc + b2_ref[...], 0.0).astype(jnp.bfloat16)

    # -- stage 3: 1x1 expansion conv + folded BN (no activation) --------------
    y3 = jnp.dot(y2, w5_ref[...], preferred_element_type=jnp.float32)
    y3 = y3 + b3_ref[...]                                     # (HW, C4_p) f32

    # -- aa: SE-style gate (GAP -> Linear -> GELU -> Linear -> sigmoid) -------
    gap = jnp.mean(y3, axis=0, keepdims=True)                 # (1, C4_p)
    h = jnp.dot(gap.astype(jnp.bfloat16), sew1_ref[...],
                preferred_element_type=jnp.float32)
    h = jax.nn.gelu(h, approximate=True)
    g = jnp.dot(h.astype(jnp.bfloat16), sew2_ref[...],
                preferred_element_type=jnp.float32)
    g = jax.nn.sigmoid(g)                                     # (1, C4_p) gate

    # -- shortcut: 1x1 conv + folded BN ----------------------------------------
    sc = jnp.dot(x, scw_ref[...], preferred_element_type=jnp.float32)
    sc = sc + scb_ref[...]

    # -- out = relu( residual + aa(residual) + shortcut ), lane-dense store ----
    out = jnp.maximum(y3 + y3 * g + sc, 0.0)
    o_ref[0] = out.astype(o_ref.dtype)


# ----------------------------------------------------------------------------
# Host-side parameter folding (BN eval-mode) and the fused forward pass.
# ----------------------------------------------------------------------------
def init_params(key, in_ch, out_ch, r=16):
    """Synthetic parameters matching the PyTorch module's structure (eval mode)."""
    exp = 4
    c4 = out_ch * exp
    cr = max(c4 // r, 1)
    ks = jax.random.split(key, 10)

    def bn(k, c):
        k1, k2, k3, k4 = jax.random.split(k, 4)
        return dict(gamma=1.0 + 0.1 * jax.random.normal(k1, (c,)),
                    beta=0.1 * jax.random.normal(k2, (c,)),
                    mean=0.1 * jax.random.normal(k3, (c,)),
                    var=jnp.abs(jax.random.normal(k4, (c,))) + 0.5)

    p = {
        "w1": 0.1 * jax.random.normal(ks[0], (in_ch, out_ch)),          # 1x1 (IO)
        "bn1": bn(ks[1], out_ch),
        "w3": 0.1 * jax.random.normal(ks[2], (3, 3, out_ch, out_ch)),   # 3x3 HWIO
        "bn2": bn(ks[3], out_ch),
        "w5": 0.1 * jax.random.normal(ks[4], (out_ch, c4)),             # 1x1 (IO)
        "bn3": bn(ks[5], c4),
        "se_w1": 0.1 * jax.random.normal(ks[6], (c4, cr)),
        "se_w2": 0.1 * jax.random.normal(ks[7], (cr, c4)),
        "sc_w": 0.1 * jax.random.normal(ks[8], (in_ch, c4)),            # shortcut 1x1
        "sc_bn": bn(ks[9], c4),
    }
    return jax.tree_util.tree_map(lambda t: t.astype(jnp.float32), p)


def fold_params(p, eps=1e-5):
    """Fold eval-mode BN into the conv weights; quantize MXU weights to bf16."""
    def fold(w, bn):
        scale = bn["gamma"] / jnp.sqrt(bn["var"] + eps)
        bias = bn["beta"] - bn["mean"] * scale
        return (w * scale).astype(jnp.bfloat16), bias.astype(jnp.float32)

    w1, b1 = fold(p["w1"], p["bn1"])
    w3, b2 = fold(p["w3"], p["bn2"])
    w5, b3 = fold(p["w5"], p["bn3"])
    # For the identity-shortcut case (stride==1 and in_ch==4*out_ch) pass
    # scw = identity, scb = 0 instead.
    scw, scb = fold(p["sc_w"], p["sc_bn"])
    return dict(w1=w1, b1=b1, w3=w3, b2=b2, w5=w5, b3=b3,
                sew1=p["se_w1"].astype(jnp.bfloat16),
                sew2=p["se_w2"].astype(jnp.bfloat16),
                scw=scw, scb=scb)


def bottleneck_forward(x_nhwc, fp, stride=1):
    """Fused Pallas forward. `fp` comes from fold_params()."""
    if stride != 1:
        # TODO(synk): stride>1 (strided 3x3 + strided shortcut) not implemented
        # in the fused kernel; the module's default (stride=1) is supported.
        raise NotImplementedError("fused kernel implements stride=1")

    N, H, W, Cin = x_nhwc.shape          # H, W ideally multiples of 8 (sublane)
    C = fp["w1"].shape[1]
    C4 = fp["w5"].shape[1]
    Cr = fp["sew1"].shape[1]
    HW = H * W

    cin_p = _round_up(Cin, _LANE)
    c_p = _round_up(C, _LANE)
    c4_p = _round_up(C4, _LANE)
    cr_p = _round_up(Cr, _LANE)

    # One-off host-side padding to lane-dense shapes; activations in bf16.
    x_p = _pad_to(x_nhwc.astype(jnp.bfloat16).reshape(N, HW, Cin), (N, HW, cin_p))
    w1 = _pad_to(fp["w1"], (cin_p, c_p))
    b1 = _pad_to(fp["b1"].reshape(1, C), (1, c_p))
    w3 = _pad_to(fp["w3"], (3, 3, c_p, c_p)).reshape(9, c_p, c_p)
    b2 = _pad_to(fp["b2"].reshape(1, C), (1, c_p))
    w5 = _pad_to(fp["w5"], (c_p, c4_p))
    b3 = _pad_to(fp["b3"].reshape(1, C4), (1, c4_p))
    sew1 = _pad_to(fp["sew1"], (c4_p, cr_p))
    sew2 = _pad_to(fp["sew2"], (cr_p, c4_p))
    scw = _pad_to(fp["scw"], (cin_p, c4_p))
    scb = _pad_to(fp["scb"].reshape(1, C4), (1, c4_p))

    flops = (2 * N * HW * (cin_p * c_p + 9 * c_p * c_p + c_p * c4_p
                           + cin_p * c4_p) + 4 * N * c4_p * cr_p)
    bytes_accessed = (x_p.size * 2 + N * HW * c4_p * 4
                      + (w1.size + w3.size + w5.size + sew1.size + sew2.size
                         + scw.size) * 2
                      + (b1.size + b2.size + b3.size + scb.size) * 4)

    kernel = functools.partial(_bottleneck_kernel, H=H, W=W)
    out = pl.pallas_call(
        kernel,
        out_shape=jax.ShapeDtypeStruct((N, HW, c4_p), jnp.float32),
        grid_spec=pltpu.PrefetchScalarGridSpec(
            num_scalar_prefetch=0,
            grid=(N,),
            in_specs=[
                pl.BlockSpec((1, HW, cin_p), lambda n: (n, 0, 0)),
                pl.BlockSpec((cin_p, c_p), lambda n: (0, 0)),
                pl.BlockSpec((1, c_p), lambda n: (0, 0)),
                pl.BlockSpec((9, c_p, c_p), lambda n: (0, 0, 0)),
                pl.BlockSpec((1, c_p), lambda n: (0, 0)),
                pl.BlockSpec((c_p, c4_p), lambda n: (0, 0)),
                pl.BlockSpec((1, c4_p), lambda n: (0, 0)),
                pl.BlockSpec((c4_p, cr_p), lambda n: (0, 0)),
                pl.BlockSpec((cr_p, c4_p), lambda n: (0, 0)),
                pl.BlockSpec((cin_p, c4_p), lambda n: (0, 0)),
                pl.BlockSpec((1, c4_p), lambda n: (0, 0)),
            ],
            out_specs=pl.BlockSpec((1, HW, c4_p), lambda n: (n, 0, 0)),
            scratch_shapes=[pltpu.VMEM((H + 2, W + 2, c_p), jnp.float32)],
        ),
        compiler_params=pltpu.CompilerParams(
            dimension_semantics=("parallel",),          # batch across v7x's 2 TCs
            vmem_limit_bytes=32 * 1024 * 1024,          # well within v7x/v5e budgets
        ),
        cost_estimate=pl.CostEstimate(
            flops=flops, transcendentals=2 * N * c4_p,
            bytes_accessed=bytes_accessed),
    )(x_p, w1, b1, w3, b2, w5, b3, sew1, sew2, scw, scb)

    return out.reshape(N, H, W, c4_p)[..., :C4]


# ----------------------------------------------------------------------------
# Pure-JAX reference (same folded-BN / bf16-MXU-operand math) for checking.
# ----------------------------------------------------------------------------
def ref_forward(x, fp, stride=1):
    f32 = jnp.float32
    q = lambda a: a.astype(jnp.bfloat16)

    def conv(a, w, s=1, pad=0):
        return lax.conv_general_dilated(
            q(a), q(w), (s, s), [(pad, pad), (pad, pad)],
            dimension_numbers=("NHWC", "HWIO", "NHWC"),
            preferred_element_type=f32)

    y = jax.nn.relu(conv(x, fp["w1"][None, None]) + fp["b1"])
    y = jax.nn.relu(conv(y, fp["w3"], s=stride, pad=1) + fp["b2"])
    y = conv(y, fp["w5"][None, None]) + fp["b3"]
    gap = jnp.mean(y, axis=(1, 2))
    h = jax.nn.gelu(jnp.dot(q(gap), q(fp["sew1"]), preferred_element_type=f32),
                    approximate=True)
    g = jax.nn.sigmoid(jnp.dot(q(h), q(fp["sew2"]), preferred_element_type=f32))
    y = y + y * g[:, None, None, :]
    sc = conv(x, fp["scw"][None, None], s=stride) + fp["scb"]
    return jax.nn.relu(y + sc)


if __name__ == "__main__":
    key = jax.random.PRNGKey(0)
    kx, kp = jax.random.split(key)

    N, H, W = 2, 8, 8
    in_channels, out_channels, stride = 16, 16, 1    # expansion -> 64 out channels

    # NHWC input (equivalent PyTorch NCHW input would be (2, 16, 8, 8))
    x = jax.random.normal(kx, (N, H, W, in_channels), dtype=jnp.float32)
    params = init_params(kp, in_channels, out_channels, r=16)
    fp = fold_params(params)

    fwd = jax.jit(bottleneck_forward, static_argnames="stride")
    out = jax.block_until_ready(fwd(x, fp, stride=stride))

    ref = ref_forward(x, fp, stride=stride)
    assert out.shape == (N, H, W, out_channels * 4)
    max_err = float(jnp.max(jnp.abs(out - ref)))
    assert jnp.allclose(out, ref, atol=2e-3, rtol=2e-3), max_err

    print("KERNEL_OK")
</pallas_src>

<mosaic_0001>
module attributes {stable_mosaic.version = 11 : i64} {
  func.func @_bottleneck_kernel(%arg0: i32, %arg1: memref<1x64x128xbf16, #tpu.memory_space<vmem>>, %arg2: memref<128x128xbf16, #tpu.memory_space<vmem>>, %arg3: memref<1x128xf32, #tpu.memory_space<vmem>>, %arg4: memref<9x128x128xbf16, #tpu.memory_space<vmem>>, %arg5: memref<1x128xf32, #tpu.memory_space<vmem>>, %arg6: memref<128x128xbf16, #tpu.memory_space<vmem>>, %arg7: memref<1x128xf32, #tpu.memory_space<vmem>>, %arg8: memref<128x128xbf16, #tpu.memory_space<vmem>>, %arg9: memref<128x128xbf16, #tpu.memory_space<vmem>>, %arg10: memref<128x128xbf16, #tpu.memory_space<vmem>>, %arg11: memref<1x128xf32, #tpu.memory_space<vmem>>, %arg12: memref<1x64x128xf32, #tpu.memory_space<vmem>>, %arg13: memref<10x10x128xf32, #tpu.memory_space<vmem>>) attributes {dimension_semantics = [#tpu.dimension_semantics<parallel>], iteration_bounds = array<i64: 2>, scalar_prefetch = 0 : i64, scratch_operands = 1 : i64, tpu.core_type = #tpu.core_type<tc>, window_params = [{transform_indices = @transform_0, window_bounds = array<i64: 1, 64, 128>}, {pipeline_mode = #tpu.pipeline_mode<synchronous>, transform_indices = @transform_1, window_bounds = array<i64: 128, 128>}, {pipeline_mode = #tpu.pipeline_mode<synchronous>, transform_indices = @transform_2, window_bounds = array<i64: 1, 128>}, {pipeline_mode = #tpu.pipeline_mode<synchronous>, transform_indices = @transform_3, window_bounds = array<i64: 9, 128, 128>}, {pipeline_mode = #tpu.pipeline_mode<synchronous>, transform_indices = @transform_4, window_bounds = array<i64: 1, 128>}, {pipeline_mode = #tpu.pipeline_mode<synchronous>, transform_indices = @transform_5, window_bounds = array<i64: 128, 128>}, {pipeline_mode = #tpu.pipeline_mode<synchronous>, transform_indices = @transform_6, window_bounds = array<i64: 1, 128>}, {pipeline_mode = #tpu.pipeline_mode<synchronous>, transform_indices = @transform_7, window_bounds = array<i64: 128, 128>}, {pipeline_mode = #tpu.pipeline_mode<synchronous>, transform_indices = @transform_8, window_bounds = array<i64: 128, 128>}, {pipeline_mode = #tpu.pipeline_mode<synchronous>, transform_indices = @transform_9, window_bounds = array<i64: 128, 128>}, {pipeline_mode = #tpu.pipeline_mode<synchronous>, transform_indices = @transform_10, window_bounds = array<i64: 1, 128>}, {transform_indices = @transform_11, window_bounds = array<i64: 1, 64, 128>}]} {
    %c0 = arith.constant 0 : index
    %c0_0 = arith.constant 0 : index
    %c0_1 = arith.constant 0 : index
    %0 = vector.load %arg1[%c0, %c0_0, %c0_1] : memref<1x64x128xbf16, #tpu.memory_space<vmem>>, vector<1x64x128xbf16>
    %1 = vector.shape_cast %0 : vector<1x64x128xbf16> to vector<64x128xbf16>
    %c0_2 = arith.constant 0 : index
    %c0_3 = arith.constant 0 : index
    %2 = vector.load %arg2[%c0_2, %c0_3] : memref<128x128xbf16, #tpu.memory_space<vmem>>, vector<128x128xbf16>
    %cst = arith.constant dense<0.000000e+00> : vector<64x128xf32>
    %3 = tpu.matmul %1, %2, %cst {dimension_numbers = #tpu.dot_dimension_numbers<[1], [0], [0], [1], [0, 0, 1, 1], [], []>} : vector<64x128xbf16>, vector<128x128xbf16>, vector<64x128xf32> -> vector<64x128xf32>
    %c0_4 = arith.constant 0 : index
    %c0_5 = arith.constant 0 : index
    %4 = vector.load %arg3[%c0_4, %c0_5] : memref<1x128xf32, #tpu.memory_space<vmem>>, vector<1x128xf32>
    %5 = vector.broadcast %4 : vector<1x128xf32> to vector<64x128xf32>
    %6 = arith.addf %3, %5 : vector<64x128xf32>
    %cst_6 = arith.constant 0.000000e+00 : f32
    %7 = vector.broadcast %cst_6 : f32 to vector<64x128xf32>
    %8 = arith.maximumf %6, %7 : vector<64x128xf32>
    %cst_7 = arith.constant 0.000000e+00 : f32
    %9 = vector.broadcast %cst_7 : f32 to vector<10x10x128xf32>
    %c0_8 = arith.constant 0 : index
    %c0_9 = arith.constant 0 : index
    %c0_10 = arith.constant 0 : index
    %10 = vector.load %arg13[%c0_8, %c0_9, %c0_10] : memref<10x10x128xf32, #tpu.memory_space<vmem>>, vector<10x10x128xf32>
    tpu.vector_store %arg13[%c0_8, %c0_9, %c0_10], %9 {strides = array<i32>} : memref<10x10x128xf32, #tpu.memory_space<vmem>>, vector<10x10x128xf32>,
    %11 = arith.truncf %8 : vector<64x128xf32> to vector<64x128xbf16>
    %12 = arith.extf %11 : vector<64x128xbf16> to vector<64x128xf32>
    %13 = vector.shape_cast %12 : vector<64x128xf32> to vector<8x8x128xf32>
    %c1 = arith.constant 1 : index
    %c1_11 = arith.constant 1 : index
    %c0_12 = arith.constant 0 : index
    %14 = vector.load %arg13[%c1, %c1_11, %c0_12] : memref<10x10x128xf32, #tpu.memory_space<vmem>>, vector<8x8x128xf32>
    tpu.vector_store %arg13[%c1, %c1_11, %c0_12], %13 {strides = array<i32>} : memref<10x10x128xf32, #tpu.memory_space<vmem>>, vector<8x8x128xf32>,
    %c0_13 = arith.constant 0 : index
    %c0_14 = arith.constant 0 : index
    %c0_15 = arith.constant 0 : index
    %15 = vector.load %arg13[%c0_13, %c0_14, %c0_15] : memref<10x10x128xf32, #tpu.memory_space<vmem>>, vector<10x8x128xf32>
    %16 = arith.truncf %15 : vector<10x8x128xf32> to vector<10x8x128xbf16>
    %c0_16 = arith.constant 0 : index
    %c1_17 = arith.constant 1 : index
    %c0_18 = arith.constant 0 : index
    %17 = vector.load %arg13[%c0_16, %c1_17, %c0_18] : memref<10x10x128xf32, #tpu.memory_space<vmem>>, vector<10x8x128xf32>
    %18 = arith.truncf %17 : vector<10x8x128xf32> to vector<10x8x128xbf16>
    %c0_19 = arith.constant 0 : index
    %c2 = arith.constant 2 : index
    %c0_20 = arith.constant 0 : index
    %19 = vector.load %arg13[%c0_19, %c2, %c0_20] : memref<10x10x128xf32, #tpu.memory_space<vmem>>, vector<10x8x128xf32>
    %20 = arith.truncf %19 : vector<10x8x128xf32> to vector<10x8x128xbf16>
    %cst_21 = arith.constant 0.000000e+00 : f32
    %21 = vector.broadcast %cst_21 : f32 to vector<64x128xf32>
    %22 = vector.extract_strided_slice %16 {offsets = [0, 0, 0], sizes = [8, 8, 128], strides = [1, 1, 1]} : vector<10x8x128xbf16> to vector<8x8x128xbf16>
    %23 = vector.shape_cast %22 : vector<8x8x128xbf16> to vector<64x128xbf16>
    %c0_22 = arith.constant 0 : index
    %c0_23 = arith.constant 0 : index
    %c0_24 = arith.constant 0 : index
    %24 = vector.load %arg4[%c0_22, %c0_23, %c0_24] : memref<9x128x128xbf16, #tpu.memory_space<vmem>>, vector<1x128x128xbf16>
    %25 = vector.shape_cast %24 : vector<1x128x128xbf16> to vector<128x128xbf16>
    %cst_25 = arith.constant dense<0.000000e+00> : vector<64x128xf32>
    %26 = tpu.matmul %23, %25, %cst_25 {dimension_numbers = #tpu.dot_dimension_numbers<[1], [0], [0], [1], [0, 0, 1, 1], [], []>} : vector<64x128xbf16>, vector<128x128xbf16>, vector<64x128xf32> -> vector<64x128xf32>
    %27 = arith.addf %21, %26 : vector<64x128xf32>
    %28 = vector.extract_strided_slice %18 {offsets = [0, 0, 0], sizes = [8, 8, 128], strides = [1, 1, 1]} : vector<10x8x128xbf16> to vector<8x8x128xbf16>
    %29 = vector.shape_cast %28 : vector<8x8x128xbf16> to vector<64x128xbf16>
    %c1_26 = arith.constant 1 : index
    %c0_27 = arith.constant 0 : index
    %c0_28 = arith.constant 0 : index
    %30 = vector.load %arg4[%c1_26, %c0_27, %c0_28] : memref<9x128x128xbf16, #tpu.memory_space<vmem>>, vector<1x128x128xbf16>
    %31 = vector.shape_cast %30 : vector<1x128x128xbf16> to vector<128x128xbf16>
    %cst_29 = arith.constant dense<0.000000e+00> : vector<64x128xf32>
    %32 = tpu.matmul %29, %31, %cst_29 {dimension_numbers = #tpu.dot_dimension_numbers<[1], [0], [0], [1], [0, 0, 1, 1], [], []>} : vector<64x128xbf16>, vector<128x128xbf16>, vector<64x128xf32> -> vector<64x128xf32>
    %33 = arith.addf %27, %32 : vector<64x128xf32>
    %34 = vector.extract_strided_slice %20 {offsets = [0, 0, 0], sizes = [8, 8, 128], strides = [1, 1, 1]} : vector<10x8x128xbf16> to vector<8x8x128xbf16>
    %35 = vector.shape_cast %34 : vector<8x8x128xbf16> to vector<64x128xbf16>
    %c2_30 = arith.constant 2 : index
    %c0_31 = arith.constant 0 : index
    %c0_32 = arith.constant 0 : index
    %36 = vector.load %arg4[%c2_30, %c0_31, %c0_32] : memref<9x128x128xbf16, #tpu.memory_space<vmem>>, vector<1x128x128xbf16>
    %37 = vector.shape_cast %36 : vector<1x128x128xbf16> to vector<128x128xbf16>
    %cst_33 = arith.constant dense<0.000000e+00> : vector<64x128xf32>
    %38 = tpu.matmul %35, %37, %cst_33 {dimension_numbers = #tpu.dot_dimension_numbers<[1], [0], [0], [1], [0, 0, 1, 1], [], []>} : vector<64x128xbf16>, vector<128x128xbf16>, vector<64x128xf32> -> vector<64x128xf32>
    %39 = arith.addf %33, %38 : vector<64x128xf32>
    %40 = vector.extract_strided_slice %16 {offsets = [1, 0, 0], sizes = [8, 8, 128], strides = [1, 1, 1]} : vector<10x8x128xbf16> to vector<8x8x128xbf16>
    %41 = vector.shape_cast %40 : vector<8x8x128xbf16> to vector<64x128xbf16>
    %c3 = arith.constant 3 : index
    %c0_34 = arith.constant 0 : index
    %c0_35 = arith.constant 0 : index
    %42 = vector.load %arg4[%c3, %c0_34, %c0_35] : memref<9x128x128xbf16, #tpu.memory_space<vmem>>, vector<1x128x128xbf16>
    %43 = vector.shape_cast %42 : vector<1x128x128xbf16> to vector<128x128xbf16>
    %cst_36 = arith.constant dense<0.000000e+00> : vector<64x128xf32>
    %44 = tpu.matmul %41, %43, %cst_36 {dimension_numbers = #tpu.dot_dimension_numbers<[1], [0], [0], [1], [0, 0, 1, 1], [], []>} : vector<64x128xbf16>, vector<128x128xbf16>, vector<64x128xf32> -> vector<64x128xf32>
    %45 = arith.addf %39, %44 : vector<64x128xf32>
    %46 = vector.extract_strided_slice %18 {offsets = [1, 0, 0], sizes = [8, 8, 128], strides = [1, 1, 1]} : vector<10x8x128xbf16> to vector<8x8x128xbf16>
    %47 = vector.shape_cast %46 : vector<8x8x128xbf16> to vector<64x128xbf16>
    %c4 = arith.constant 4 : index
    %c0_37 = arith.constant 0 : index
    %c0_38 = arith.constant 0 : index
    %48 = vector.load %arg4[%c4, %c0_37, %c0_38] : memref<9x128x128xbf16, #tpu.memory_space<vmem>>, vector<1x128x128xbf16>
    %49 = vector.shape_cast %48 : vector<1x128x128xbf16> to vector<128x128xbf16>
    %cst_39 = arith.constant dense<0.000000e+00> : vector<64x128xf32>
    %50 = tpu.matmul %47, %49, %cst_39 {dimension_numbers = #tpu.dot_dimension_numbers<[1], [0], [0], [1], [0, 0, 1, 1], [], []>} : vector<64x128xbf16>, vector<128x128xbf16>, vector<64x128xf32> -> vector<64x128xf32>
    %51 = arith.addf %45, %50 : vector<64x128xf32>
    %52 = vector.extract_strided_slice %20 {offsets = [1, 0, 0], sizes = [8, 8, 128], strides = [1, 1, 1]} : vector<10x8x128xbf16> to vector<8x8x128xbf16>
    %53 = vector.shape_cast %52 : vector<8x8x128xbf16> to vector<64x128xbf16>
    %c5 = arith.constant 5 : index
    %c0_40 = arith.constant 0 : index
    %c0_41 = arith.constant 0 : index
    %54 = vector.load %arg4[%c5, %c0_40, %c0_41] : memref<9x128x128xbf16, #tpu.memory_space<vmem>>, vector<1x128x128xbf16>
    %55 = vector.shape_cast %54 : vector<1x128x128xbf16> to vector<128x128xbf16>
    %cst_42 = arith.constant dense<0.000000e+00> : vector<64x128xf32>
    %56 = tpu.matmul %53, %55, %cst_42 {dimension_numbers = #tpu.dot_dimension_numbers<[1], [0], [0], [1], [0, 0, 1, 1], [], []>} : vector<64x128xbf16>, vector<128x128xbf16>, vector<64x128xf32> -> vector<64x128xf32>
    %57 = arith.addf %51, %56 : vector<64x128xf32>
    %58 = vector.extract_strided_slice %16 {offsets = [2, 0, 0], sizes = [8, 8, 128], strides = [1, 1, 1]} : vector<10x8x128xbf16> to vector<8x8x128xbf16>
    %59 = vector.shape_cast %58 : vector<8x8x128xbf16> to vector<64x128xbf16>
    %c6 = arith.constant 6 : index
    %c0_43 = arith.constant 0 : index
    %c0_44 = arith.constant 0 : index
    %60 = vector.load %arg4[%c6, %c0_43, %c0_44] : memref<9x128x128xbf16, #tpu.memory_space<vmem>>, vector<1x128x128xbf16>
    %61 = vector.shape_cast %60 : vector<1x128x128xbf16> to vector<128x128xbf16>
    %cst_45 = arith.constant dense<0.000000e+00> : vector<64x128xf32>
    %62 = tpu.matmul %59, %61, %cst_45 {dimension_numbers = #tpu.dot_dimension_numbers<[1], [0], [0], [1], [0, 0, 1, 1], [], []>} : vector<64x128xbf16>, vector<128x128xbf16>, vector<64x128xf32> -> vector<64x128xf32>
    %63 = arith.addf %57, %62 : vector<64x128xf32>
    %64 = vector.extract_strided_slice %18 {offsets = [2, 0, 0], sizes = [8, 8, 128], strides = [1, 1, 1]} : vector<10x8x128xbf16> to vector<8x8x128xbf16>
    %65 = vector.shape_cast %64 : vector<8x8x128xbf16> to vector<64x128xbf16>
    %c7 = arith.constant 7 : index
    %c0_46 = arith.constant 0 : index
    %c0_47 = arith.constant 0 : index
    %66 = vector.load %arg4[%c7, %c0_46, %c0_47] : memref<9x128x128xbf16, #tpu.memory_space<vmem>>, vector<1x128x128xbf16>
    %67 = vector.shape_cast %66 : vector<1x128x128xbf16> to vector<128x128xbf16>
    %cst_48 = arith.constant dense<0.000000e+00> : vector<64x128xf32>
    %68 = tpu.matmul %65, %67, %cst_48 {dimension_numbers = #tpu.dot_dimension_numbers<[1], [0], [0], [1], [0, 0, 1, 1], [], []>} : vector<64x128xbf16>, vector<128x128xbf16>, vector<64x128xf32> -> vector<64x128xf32>
    %69 = arith.addf %63, %68 : vector<64x128xf32>
    %70 = vector.extract_strided_slice %20 {offsets = [2, 0, 0], sizes = [8, 8, 128], strides = [1, 1, 1]} : vector<10x8x128xbf16> to vector<8x8x128xbf16>
    %71 = vector.shape_cast %70 : vector<8x8x128xbf16> to vector<64x128xbf16>
    %c8 = arith.constant 8 : index
    %c0_49 = arith.constant 0 : index
    %c0_50 = arith.constant 0 : index
    %72 = vector.load %arg4[%c8, %c0_49, %c0_50] : memref<9x128x128xbf16, #tpu.memory_space<vmem>>, vector<1x128x128xbf16>
    %73 = vector.shape_cast %72 : vector<1x128x128xbf16> to vector<128x128xbf16>
    %cst_51 = arith.constant dense<0.000000e+00> : vector<64x128xf32>
    %74 = tpu.matmul %71, %73, %cst_51 {dimension_numbers = #tpu.dot_dimension_numbers<[1], [0], [0], [1], [0, 0, 1, 1], [], []>} : vector<64x128xbf16>, vector<128x128xbf16>, vector<64x128xf32> -> vector<64x128xf32>
    %75 = arith.addf %69, %74 : vector<64x128xf32>
    %c0_52 = arith.constant 0 : index
    %c0_53 = arith.constant 0 : index
    %76 = vector.load %arg5[%c0_52, %c0_53] : memref<1x128xf32, #tpu.memory_space<vmem>>, vector<1x128xf32>
    %77 = vector.broadcast %76 : vector<1x128xf32> to vector<64x128xf32>
    %78 = arith.addf %75, %77 : vector<64x128xf32>
    %cst_54 = arith.constant 0.000000e+00 : f32
    %79 = vector.broadcast %cst_54 : f32 to vector<64x128xf32>
    %80 = arith.maximumf %78, %79 : vector<64x128xf32>
    %81 = arith.truncf %80 : vector<64x128xf32> to vector<64x128xbf16>
    %c0_55 = arith.constant 0 : index
    %c0_56 = arith.constant 0 : index
    %82 = vector.load %arg6[%c0_55, %c0_56] : memref<128x128xbf16, #tpu.memory_space<vmem>>, vector<128x128xbf16>
    %cst_57 = arith.constant dense<0.000000e+00> : vector<64x128xf32>
    %83 = tpu.matmul %81, %82, %cst_57 {dimension_numbers = #tpu.dot_dimension_numbers<[1], [0], [0], [1], [0, 0, 1, 1], [], []>} : vector<64x128xbf16>, vector<128x128xbf16>, vector<64x128xf32> -> vector<64x128xf32>
    %c0_58 = arith.constant 0 : index
    %c0_59 = arith.constant 0 : index
    %84 = vector.load %arg7[%c0_58, %c0_59] : memref<1x128xf32, #tpu.memory_space<vmem>>, vector<1x128xf32>
    %85 = vector.broadcast %84 : vector<1x128xf32> to vector<64x128xf32>
    %86 = arith.addf %83, %85 : vector<64x128xf32>
    %cst_60 = arith.constant dense<0.000000e+00> : vector<128xf32>
    %87 = vector.multi_reduction <add>, %86, %cst_60 [0] : vector<64x128xf32> to vector<128xf32>
    %88 = vector.shape_cast %87 : vector<128xf32> to vector<1x128xf32>
    %cst_61 = arith.constant 6.400000e+01 : f32
    %89 = vector.broadcast %cst_61 : f32 to vector<1x128xf32>
    %90 = arith.divf %88, %89 : vector<1x128xf32>
    %91 = arith.truncf %90 : vector<1x128xf32> to vector<1x128xbf16>
    %c0_62 = arith.constant 0 : index
    %c0_63 = arith.constant 0 : index
    %92 = vector.load %arg8[%c0_62, %c0_63] : memref<128x128xbf16, #tpu.memory_space<vmem>>, vector<128x128xbf16>
    %cst_64 = arith.constant dense<0.000000e+00> : vector<1x128xf32>
    %93 = tpu.matmul %91, %92, %cst_64 {dimension_numbers = #tpu.dot_dimension_numbers<[1], [0], [0], [1], [0, 0, 1, 1], [], []>} : vector<1x128xbf16>, vector<128x128xbf16>, vector<1x128xf32> -> vector<1x128xf32>
    %94 = arith.mulf %93, %93 : vector<1x128xf32>
    %95 = arith.mulf %93, %94 : vector<1x128xf32>
    %cst_65 = arith.constant 4.471500e-02 : f32
    %96 = vector.broadcast %cst_65 : f32 to vector<1x128xf32>
    %97 = arith.mulf %96, %95 : vector<1x128xf32>
    %98 = arith.addf %93, %97 : vector<1x128xf32>
    %cst_66 = arith.constant 0.797884583 : f32
    %99 = vector.broadcast %cst_66 : f32 to vector<1x128xf32>
    %100 = arith.mulf %99, %98 : vector<1x128xf32>
    %101 = math.tanh %100 : vector<1x128xf32>
    %cst_67 = arith.constant 1.000000e+00 : f32
    %102 = vector.broadcast %cst_67 : f32 to vector<1x128xf32>
    %103 = arith.addf %102, %101 : vector<1x128xf32>
    %cst_68 = arith.constant 5.000000e-01 : f32
    %104 = vector.broadcast %cst_68 : f32 to vector<1x128xf32>
    %105 = arith.mulf %104, %103 : vector<1x128xf32>
    %106 = arith.mulf %93, %105 : vector<1x128xf32>
    %107 = arith.truncf %106 : vector<1x128xf32> to vector<1x128xbf16>
    %c0_69 = arith.constant 0 : index
    %c0_70 = arith.constant 0 : index
    %108 = vector.load %arg9[%c0_69, %c0_70] : memref<128x128xbf16, #tpu.memory_space<vmem>>, vector<128x128xbf16>
    %cst_71 = arith.constant dense<0.000000e+00> : vector<1x128xf32>
    %109 = tpu.matmul %107, %108, %cst_71 {dimension_numbers = #tpu.dot_dimension_numbers<[1], [0], [0], [1], [0, 0, 1, 1], [], []>} : vector<1x128xbf16>, vector<128x128xbf16>, vector<1x128xf32> -> vector<1x128xf32>
    %110 = arith.negf %109 : vector<1x128xf32>
    %111 = math.exp %110 : vector<1x128xf32>
    %cst_72 = arith.constant 1.000000e+00 : f32
    %112 = vector.broadcast %cst_72 : f32 to vector<1x128xf32>
    %113 = arith.addf %112, %111 : vector<1x128xf32>
    %114 = arith.divf %112, %113 : vector<1x128xf32>
    %c0_73 = arith.constant 0 : index
    %c0_74 = arith.constant 0 : index
    %115 = vector.load %arg10[%c0_73, %c0_74] : memref<128x128xbf16, #tpu.memory_space<vmem>>, vector<128x128xbf16>
    %cst_75 = arith.constant dense<0.000000e+00> : vector<64x128xf32>
    %116 = tpu.matmul %1, %115, %cst_75 {dimension_numbers = #tpu.dot_dimension_numbers<[1], [0], [0], [1], [0, 0, 1, 1], [], []>} : vector<64x128xbf16>, vector<128x128xbf16>, vector<64x128xf32> -> vector<64x128xf32>
    %c0_76 = arith.constant 0 : index
    %c0_77 = arith.constant 0 : index
    %117 = vector.load %arg11[%c0_76, %c0_77] : memref<1x128xf32, #tpu.memory_space<vmem>>, vector<1x128xf32>
    %118 = vector.broadcast %117 : vector<1x128xf32> to vector<64x128xf32>
    %119 = arith.addf %116, %118 : vector<64x128xf32>
    %120 = vector.broadcast %114 : vector<1x128xf32> to vector<64x128xf32>
    %121 = arith.mulf %86, %120 : vector<64x128xf32>
    %122 = arith.addf %86, %121 : vector<64x128xf32>
    %123 = arith.addf %122, %119 : vector<64x128xf32>
    %cst_78 = arith.constant 0.000000e+00 : f32
    %124 = vector.broadcast %cst_78 : f32 to vector<64x128xf32>
    %125 = arith.maximumf %123, %124 : vector<64x128xf32>
    %c0_79 = arith.constant 0 : index
    %c0_80 = arith.constant 0 : index
    %c0_81 = arith.constant 0 : index
    %126 = vector.load %arg12[%c0_79, %c0_80, %c0_81] : memref<1x64x128xf32, #tpu.memory_space<vmem>>, vector<1x64x128xf32>
    %127 = vector.shape_cast %126 : vector<1x64x128xf32> to vector<64x128xf32>
    %128 = vector.shape_cast %125 : vector<64x128xf32> to vector<1x64x128xf32>
    tpu.vector_store %arg12[%c0_79, %c0_80, %c0_81], %128 {strides = array<i32>} : memref<1x64x128xf32, #tpu.memory_space<vmem>>, vector<1x64x128xf32>,
    return
  }
  func.func @transform_0(%arg0: i32) -> (i32, i32, i32) {
    %c0_i32 = arith.constant 0 : i32
    %c0_i32_0 = arith.constant 0 : i32
    %c0_i32_1 = arith.constant 0 : i32
    return %arg0, %c0_i32, %c0_i32_0 : i32, i32, i32
  }
  func.func @transform_1(%arg0: i32) -> (i32, i32) {
    %c0_i32 = arith.constant 0 : i32
    %c0_i32_0 = arith.constant 0 : i32
    %c0_i32_1 = arith.constant 0 : i32
    return %c0_i32, %c0_i32_0 : i32, i32
  }
  func.func @transform_2(%arg0: i32) -> (i32, i32) {
    %c0_i32 = arith.constant 0 : i32
    %c0_i32_0 = arith.constant 0 : i32
    %c0_i32_1 = arith.constant 0 : i32
    return %c0_i32, %c0_i32_0 : i32, i32
  }
  func.func @transform_3(%arg0: i32) -> (i32, i32, i32) {
    %c0_i32 = arith.constant 0 : i32
    %c0_i32_0 = arith.constant 0 : i32
    %c0_i32_1 = arith.constant 0 : i32
    %c0_i32_2 = arith.constant 0 : i32
    return %c0_i32, %c0_i32_0, %c0_i32_1 : i32, i32, i32
  }
  func.func @transform_4(%arg0: i32) -> (i32, i32) {
    %c0_i32 = arith.constant 0 : i32
    %c0_i32_0 = arith.constant 0 : i32
    %c0_i32_1 = arith.constant 0 : i32
    return %c0_i32, %c0_i32_0 : i32, i32
  }
  func.func @transform_5(%arg0: i32) -> (i32, i32) {
    %c0_i32 = arith.constant 0 : i32
    %c0_i32_0 = arith.constant 0 : i32
    %c0_i32_1 = arith.constant 0 : i32
    return %c0_i32, %c0_i32_0 : i32, i32
  }
  func.func @transform_6(%arg0: i32) -> (i32, i32) {
    %c0_i32 = arith.constant 0 : i32
    %c0_i32_0 = arith.constant 0 : i32
    %c0_i32_1 = arith.constant 0 : i32
    return %c0_i32, %c0_i32_0 : i32, i32
  }
  func.func @transform_7(%arg0: i32) -> (i32, i32) {
    %c0_i32 = arith.constant 0 : i32
    %c0_i32_0 = arith.constant 0 : i32
    %c0_i32_1 = arith.constant 0 : i32
    return %c0_i32, %c0_i32_0 : i32, i32
  }
  func.func @transform_8(%arg0: i32) -> (i32, i32) {
    %c0_i32 = arith.constant 0 : i32
    %c0_i32_0 = arith.constant 0 : i32
    %c0_i32_1 = arith.constant 0 : i32
    return %c0_i32, %c0_i32_0 : i32, i32
  }
  func.func @transform_9(%arg0: i32) -> (i32, i32) {
    %c0_i32 = arith.constant 0 : i32
    %c0_i32_0 = arith.constant 0 : i32
    %c0_i32_1 = arith.constant 0 : i32
    return %c0_i32, %c0_i32_0 : i32, i32
  }
  func.func @transform_10(%arg0: i32) -> (i32, i32) {
    %c0_i32 = arith.constant 0 : i32
    %c0_i32_0 = arith.constant 0 : i32
    %c0_i32_1 = arith.constant 0 : i32
    return %c0_i32, %c0_i32_0 : i32, i32
  }
  func.func @transform_11(%arg0: i32) -> (i32, i32, i32) {
    %c0_i32 = arith.constant 0 : i32
    %c0_i32_0 = arith.constant 0 : i32
    %c0_i32_1 = arith.constant 0 : i32
    return %arg0, %c0_i32, %c0_i32_0 : i32, i32, i32
  }
}

</mosaic_0001>

<llo_original>
// kernel: bottleneck_forward.1
$region0: #{bottleneck_forward.1}
  #allocation0 [shape = 'u32[]', space=smem, size = 0x4, offset = 0x4, fixed_abs, tag = 'smem constant byte address 0x4 - core index']
  #allocation1 [shape = 'u32[144,128]{1,0:T(1,128)}', space=vmem, size = 0x12000, scoped, tag = 'internal scratch']
  #allocation2 [shape = 'f32[10,10,128]{2,1,0:T(8,128)}', space=vmem, size = 0x14000, scoped, tag = 'scratch operand']
  %s0 = inlined_call_operand.vmem [shape: bf16[2,64,128], index: 0, kind: input, shape index: {}]
  %s1 = inlined_call_operand.vmem [shape: bf16[128,128], index: 1, kind: input, shape index: {}]
  %s2 = inlined_call_operand.vmem [shape: f32[1,128], index: 2, kind: input, shape index: {}]
  %s3 = inlined_call_operand.vmem [shape: bf16[9,128,128], index: 3, kind: input, shape index: {}]
  %s4 = inlined_call_operand.vmem [shape: f32[1,128], index: 4, kind: input, shape index: {}]
  %s5 = inlined_call_operand.vmem [shape: bf16[128,128], index: 5, kind: input, shape index: {}]
  %s6 = inlined_call_operand.vmem [shape: f32[1,128], index: 6, kind: input, shape index: {}]
  %s7 = inlined_call_operand.vmem [shape: bf16[128,128], index: 7, kind: input, shape index: {}]
  %s8 = inlined_call_operand.vmem [shape: bf16[128,128], index: 8, kind: input, shape index: {}]
  %s9 = inlined_call_operand.vmem [shape: bf16[128,128], index: 9, kind: input, shape index: {}]
  %s10 = inlined_call_operand.vmem [shape: f32[1,128], index: 10, kind: input, shape index: {}]
  %s11 = inlined_call_operand.hbm [shape: f32[2,64,128], index: 11, kind: output, shape index: {}]
  %s12 = sld [smem:[#allocation0]]
  $region77: #{bottleneck_forward.1} parent=0
    _
  %s14 = ssub.s32 1, %s12
  %s15 = scalar_select 0, %s14, %s12
  $region1: #{bottleneck_forward.1} parent=0
    #allocation3 [shape = 'u8[65536]{0}', space=vmem, size = 0x10000, scoped, tag = 'output window, operand 0']
    #allocation4 [shape = 's32[2]{0}', space=sflag, size = 0x8, scoped, tag = 'scoped memory for bottleneck_forward.1']
    %16 = vsyncpa [#allocation4], 0
    %s17 = scalar_lea.sflag [#allocation4], 1
    %18 = vsyncpa %s17, 0
    loop: start=0, step=1, limit=4
    $region2: #{bottleneck_forward.1} parent=1 // loop_pre_header
      _
    $region3: #{bottleneck_forward.1} parent=1 // loop_header
      %s20 = sphi 0, %s24
      %p21 = scmp.ge.s32.totalorder %s20, 4
      %s30 = sphi 0, %s32
      %s33 = sphi 0, %s30
      %s34 = sphi 0, %s33
      %s50 = sphi 0, %s34
      %s54 = sphi 0, %s54
      %s56 = sphi 0, %s54
      %s57 = sphi 0, %s56
      %s71 = sphi 0, %s57
      %s75 = sphi 0, %s75
      %s77 = sphi 0, %s75
      %s78 = sphi 0, %s77
      %s92 = sphi 0, %s78
      %s96 = sphi 0, %s96
      %s98 = sphi 0, %s96
      %s99 = sphi 0, %s98
      %s113 = sphi 0, %s99
      %s117 = sphi 0, %s117
      %s119 = sphi 0, %s117
      %s120 = sphi 0, %s119
      %s134 = sphi 0, %s120
      %s138 = sphi 0, %s138
      %s140 = sphi 0, %s138
      %s141 = sphi 0, %s140
      %s155 = sphi 0, %s141
      %s159 = sphi 0, %s159
      %s161 = sphi 0, %s159
      %s162 = sphi 0, %s161
      %s176 = sphi 0, %s162
      %s180 = sphi 0, %s180
      %s182 = sphi 0, %s180
      %s183 = sphi 0, %s182
      %s197 = sphi 0, %s183
      %s201 = sphi 0, %s201
      %s203 = sphi 0, %s201
      %s204 = sphi 0, %s203
      %s218 = sphi 0, %s204
      %s222 = sphi 0, %s222
      %s224 = sphi 0, %s222
      %s225 = sphi 0, %s224
      %s239 = sphi 0, %s225
      %s243 = sphi 0, %s243
      %s245 = sphi 0, %s243
      %s246 = sphi 0, %s245
      %s260 = sphi 0, %s246
      %s266 = sphi 0, %s268
      %s269 = sphi 0, %s266
      %s270 = sphi 0, %s269
      %s286 = sphi 0, %s270
    $region4: #{bottleneck_forward.1} parent=1 // loop_header_branch
      %23 = sbr.rel (%p21) target = $region8
    $region5: #{bottleneck_forward.1} parent=1 // loop_body
      %s25 = ssub.s32 %s20, 1
      %s26 = ssub.s32 %s20, 2
      %s27 = sadd.s32 %s20, 1
      %s28 = ssub.s32 %s20, %s27
      %p29 = scmp.eq.s32.totalorder %s28, 0
      %s31 = sadd.s32 %s30, 1
      %s32 = scalar_select %p29, %s30, %s31
      %p35 = pneg %p29
      %p36 = scmp.eq.s32.totalorder %s20, 1
      %p37 = por %p35, %p36
      %p38 = scmp.ne.s32.totalorder %s30, %s33
      %p39 = scmp.eq.s32.totalorder %s20, 0
      %p40 = por %p38, %p39
      %p41 = scmp.ne.s32.totalorder %s30, %s33
      %p42 = scmp.eq.s32.totalorder %s25, 1
      %p43 = por %p41, %p42
      %p44 = scmp.ne.s32.totalorder %s33, %s34
      %p45 = scmp.eq.s32.totalorder %s25, 0
      %p46 = por %p44, %p45
      %p47 = scmp.ne.s32.totalorder %s33, %s34
      %p48 = scmp.eq.s32.totalorder %s26, 1
      %p49 = por %p47, %p48
      %p51 = scmp.ne.s32.totalorder %s34, %s50
      %p52 = scmp.eq.s32.totalorder %s26, 0
      %p53 = por %p51, %p52
      %s55 = sadd.s32 %s54, 1
      %p58 = scmp.eq.s32.totalorder %s20, 1
      %p59 = scmp.ne.s32.totalorder %s54, %s56
      %p60 = scmp.eq.s32.totalorder %s20, 0
      %p61 = por %p59, %p60
      %p62 = scmp.ne.s32.totalorder %s54, %s56
      %p63 = scmp.eq.s32.totalorder %s25, 1
      %p64 = por %p62, %p63
      %p65 = scmp.ne.s32.totalorder %s56, %s57
      %p66 = scmp.eq.s32.totalorder %s25, 0
      %p67 = por %p65, %p66
      %p68 = scmp.ne.s32.totalorder %s56, %s57
      %p69 = scmp.eq.s32.totalorder %s26, 1
      %p70 = por %p68, %p69
      %p72 = scmp.ne.s32.totalorder %s57, %s71
      %p73 = scmp.eq.s32.totalorder %s26, 0
      %p74 = por %p72, %p73
      %s76 = sadd.s32 %s75, 1
      %p79 = scmp.eq.s32.totalorder %s20, 1
      %p80 = scmp.ne.s32.totalorder %s75, %s77
      %p81 = scmp.eq.s32.totalorder %s20, 0
      %p82 = por %p80, %p81
      %p83 = scmp.ne.s32.totalorder %s75, %s77
      %p84 = scmp.eq.s32.totalorder %s25, 1
      %p85 = por %p83, %p84
      %p86 = scmp.ne.s32.totalorder %s77, %s78
      %p87 = scmp.eq.s32.totalorder %s25, 0
      %p88 = por %p86, %p87
      %p89 = scmp.ne.s32.totalorder %s77, %s78
      %p90 = scmp.eq.s32.totalorder %s26, 1
      %p91 = por %p89, %p90
      %p93 = scmp.ne.s32.totalorder %s78, %s92
      %p94 = scmp.eq.s32.totalorder %s26, 0
      %p95 = por %p93, %p94
      %s97 = sadd.s32 %s96, 1
      %p100 = scmp.eq.s32.totalorder %s20, 1
      %p101 = scmp.ne.s32.totalorder %s96, %s98
      %p102 = scmp.eq.s32.totalorder %s20, 0
      %p103 = por %p101, %p102
      %p104 = scmp.ne.s32.totalorder %s96, %s98
      %p105 = scmp.eq.s32.totalorder %s25, 1
      %p106 = por %p104, %p105
      %p107 = scmp.ne.s32.totalorder %s98, %s99
      %p108 = scmp.eq.s32.totalorder %s25, 0
      %p109 = por %p107, %p108
      %p110 = scmp.ne.s32.totalorder %s98, %s99
      %p111 = scmp.eq.s32.totalorder %s26, 1
      %p112 = por %p110, %p111
      %p114 = scmp.ne.s32.totalorder %s99, %s113
      %p115 = scmp.eq.s32.totalorder %s26, 0
      %p116 = por %p114, %p115
      %s118 = sadd.s32 %s117, 1
      %p121 = scmp.eq.s32.totalorder %s20, 1
      %p122 = scmp.ne.s32.totalorder %s117, %s119
      %p123 = scmp.eq.s32.totalorder %s20, 0
      %p124 = por %p122, %p123
      %p125 = scmp.ne.s32.totalorder %s117, %s119
      %p126 = scmp.eq.s32.totalorder %s25, 1
      %p127 = por %p125, %p126
      %p128 = scmp.ne.s32.totalorder %s119, %s120
      %p129 = scmp.eq.s32.totalorder %s25, 0
      %p130 = por %p128, %p129
      %p131 = scmp.ne.s32.totalorder %s119, %s120
      %p132 = scmp.eq.s32.totalorder %s26, 1
      %p133 = por %p131, %p132
      %p135 = scmp.ne.s32.totalorder %s120, %s134
      %p136 = scmp.eq.s32.totalorder %s26, 0
      %p137 = por %p135, %p136
      %s139 = sadd.s32 %s138, 1
      %p142 = scmp.eq.s32.totalorder %s20, 1
      %p143 = scmp.ne.s32.totalorder %s138, %s140
      %p144 = scmp.eq.s32.totalorder %s20, 0
      %p145 = por %p143, %p144
      %p146 = scmp.ne.s32.totalorder %s138, %s140
      %p147 = scmp.eq.s32.totalorder %s25, 1
      %p148 = por %p146, %p147
      %p149 = scmp.ne.s32.totalorder %s140, %s141
      %p150 = scmp.eq.s32.totalorder %s25, 0
      %p151 = por %p149, %p150
      %p152 = scmp.ne.s32.totalorder %s140, %s141
      %p153 = scmp.eq.s32.totalorder %s26, 1
      %p154 = por %p152, %p153
      %p156 = scmp.ne.s32.totalorder %s141, %s155
      %p157 = scmp.eq.s32.totalorder %s26, 0
      %p158 = por %p156, %p157
      %s160 = sadd.s32 %s159, 1
      %p163 = scmp.eq.s32.totalorder %s20, 1
      %p164 = scmp.ne.s32.totalorder %s159, %s161
      %p165 = scmp.eq.s32.totalorder %s20, 0
      %p166 = por %p164, %p165
      %p167 = scmp.ne.s32.totalorder %s159, %s161
      %p168 = scmp.eq.s32.totalorder %s25, 1
      %p169 = por %p167, %p168
      %p170 = scmp.ne.s32.totalorder %s161, %s162
      %p171 = scmp.eq.s32.totalorder %s25, 0
      %p172 = por %p170, %p171
      %p173 = scmp.ne.s32.totalorder %s161, %s162
      %p174 = scmp.eq.s32.totalorder %s26, 1
      %p175 = por %p173, %p174
      %p177 = scmp.ne.s32.totalorder %s162, %s176
      %p178 = scmp.eq.s32.totalorder %s26, 0
      %p179 = por %p177, %p178
      %s181 = sadd.s32 %s180, 1
      %p184 = scmp.eq.s32.totalorder %s20, 1
      %p185 = scmp.ne.s32.totalorder %s180, %s182
      %p186 = scmp.eq.s32.totalorder %s20, 0
      %p187 = por %p185, %p186
      %p188 = scmp.ne.s32.totalorder %s180, %s182
      %p189 = scmp.eq.s32.totalorder %s25, 1
      %p190 = por %p188, %p189
      %p191 = scmp.ne.s32.totalorder %s182, %s183
      %p192 = scmp.eq.s32.totalorder %s25, 0
      %p193 = por %p191, %p192
      %p194 = scmp.ne.s32.totalorder %s182, %s183
      %p195 = scmp.eq.s32.totalorder %s26, 1
      %p196 = por %p194, %p195
      %p198 = scmp.ne.s32.totalorder %s183, %s197
      %p199 = scmp.eq.s32.totalorder %s26, 0
      %p200 = por %p198, %p199
      %s202 = sadd.s32 %s201, 1
      %p205 = scmp.eq.s32.totalorder %s20, 1
      %p206 = scmp.ne.s32.totalorder %s201, %s203
      %p207 = scmp.eq.s32.totalorder %s20, 0
      %p208 = por %p206, %p207
      %p209 = scmp.ne.s32.totalorder %s201, %s203
      %p210 = scmp.eq.s32.totalorder %s25, 1
      %p211 = por %p209, %p210
      %p212 = scmp.ne.s32.totalorder %s203, %s204
      %p213 = scmp.eq.s32.totalorder %s25, 0
      %p214 = por %p212, %p213
      %p215 = scmp.ne.s32.totalorder %s203, %s204
      %p216 = scmp.eq.s32.totalorder %s26, 1
      %p217 = por %p215, %p216
      %p219 = scmp.ne.s32.totalorder %s204, %s218
      %p220 = scmp.eq.s32.totalorder %s26, 0
      %p221 = por %p219, %p220
      %s223 = sadd.s32 %s222, 1
      %p226 = scmp.eq.s32.totalorder %s20, 1
      %p227 = scmp.ne.s32.totalorder %s222, %s224
      %p228 = scmp.eq.s32.totalorder %s20, 0
      %p229 = por %p227, %p228
      %p230 = scmp.ne.s32.totalorder %s222, %s224
      %p231 = scmp.eq.s32.totalorder %s25, 1
      %p232 = por %p230, %p231
      %p233 = scmp.ne.s32.totalorder %s224, %s225
      %p234 = scmp.eq.s32.totalorder %s25, 0
      %p235 = por %p233, %p234
      %p236 = scmp.ne.s32.totalorder %s224, %s225
      %p237 = scmp.eq.s32.totalorder %s26, 1
      %p238 = por %p236, %p237
      %p240 = scmp.ne.s32.totalorder %s225, %s239
      %p241 = scmp.eq.s32.totalorder %s26, 0
      %p242 = por %p240, %p241
      %s244 = sadd.s32 %s243, 1
      %p247 = scmp.eq.s32.totalorder %s20, 1
      %p248 = scmp.ne.s32.totalorder %s243, %s245
      %p249 = scmp.eq.s32.totalorder %s20, 0
      %p250 = por %p248, %p249
      %p251 = scmp.ne.s32.totalorder %s243, %s245
      %p252 = scmp.eq.s32.totalorder %s25, 1
      %p253 = por %p251, %p252
      %p254 = scmp.ne.s32.totalorder %s245, %s246
      %p255 = scmp.eq.s32.totalorder %s25, 0
      %p256 = por %p254, %p255
      %p257 = scmp.ne.s32.totalorder %s245, %s246
      %p258 = scmp.eq.s32.totalorder %s26, 1
      %p259 = por %p257, %p258
      %p261 = scmp.ne.s32.totalorder %s246, %s260
      %p262 = scmp.eq.s32.totalorder %s26, 0
      %p263 = por %p261, %p262
      %s264 = ssub.s32 %s20, %s27
      %p265 = scmp.eq.s32.totalorder %s264, 0
      %s267 = sadd.s32 %s266, 1
      %s268 = scalar_select %p265, %s266, %s267
      %p271 = pneg %p265
      %p272 = scmp.eq.s32.totalorder %s20, 1
      %p273 = por %p271, %p272
      %p274 = scmp.ne.s32.totalorder %s266, %s269
      %p275 = scmp.eq.s32.totalorder %s20, 0
      %p276 = por %p274, %p275
      %p277 = scmp.ne.s32.totalorder %s266, %s269
      %p278 = scmp.eq.s32.totalorder %s25, 1
      %p279 = por %p277, %p278
      %p280 = scmp.ne.s32.totalorder %s269, %s270
      %p281 = scmp.eq.s32.totalorder %s25, 0
      %p282 = por %p280, %p281
      %p283 = scmp.ne.s32.totalorder %s269, %s270
      %p284 = scmp.eq.s32.totalorder %s26, 1
      %p285 = por %p283, %p284
      %p287 = scmp.ne.s32.totalorder %s270, %s286
      %p288 = scmp.eq.s32.totalorder %s26, 0
      %p289 = por %p287, %p288
      %p290 = scmp.le.s32.totalorder 1, %s20
      %p291 = scmp.lt.s32.totalorder %s20, 3
      %p292 = pnand %p290, %p291
      %p293 = pneg %p292
      // Predicated region
      $region9: #{bottleneck_forward.1} parent=5 // pred_check
        _
      $region10: #{bottleneck_forward.1} parent=5 // pred_check_branch
        %295 = sbr.rel (%p292) target = $region12
      $region11: #{bottleneck_forward.1} parent=5 // pred_region
        %s296 = ssub.s32 %s20, 1
        // Predicated region
        $region13: #{bottleneck_forward.1} parent=11 // pred_check
          %p297 = pneg %p67
        $region14: #{bottleneck_forward.1} parent=11 // pred_check_branch
          %299 = sbr.rel (%p297) target = $region16
        $region15: #{bottleneck_forward.1} parent=11 // pred_region
          _
        $region16: #{bottleneck_forward.1} parent=11 // pred_fallthru
          _
        // Predicated region
        $region17: #{bottleneck_forward.1} parent=11 // pred_check
          %p300 = pneg %p88
        $region18: #{bottleneck_forward.1} parent=11 // pred_check_branch
          %302 = sbr.rel (%p300) target = $region20
        $region19: #{bottleneck_forward.1} parent=11 // pred_region
          _
        $region20: #{bottleneck_forward.1} parent=11 // pred_fallthru
          _
        // Predicated region
        $region21: #{bottleneck_forward.1} parent=11 // pred_check
          %p303 = pneg %p109
        $region22: #{bottleneck_forward.1} parent=11 // pred_check_branch
          %305 = sbr.rel (%p303) target = $region24
        $region23: #{bottleneck_forward.1} parent=11 // pred_region
          _
        $region24: #{bottleneck_forward.1} parent=11 // pred_fallthru
          _
        // Predicated region
        $region25: #{bottleneck_forward.1} parent=11 // pred_check
          %p306 = pneg %p130
        $region26: #{bottleneck_forward.1} parent=11 // pred_check_branch
          %308 = sbr.rel (%p306) target = $region28
        $region27: #{bottleneck_forward.1} parent=11 // pred_region
          _
        $region28: #{bottleneck_forward.1} parent=11 // pred_fallthru
          _
        // Predicated region
        $region29: #{bottleneck_forward.1} parent=11 // pred_check
          %p309 = pneg %p151
        $region30: #{bottleneck_forward.1} parent=11 // pred_check_branch
          %311 = sbr.rel (%p309) target = $region32
        $region31: #{bottleneck_forward.1} parent=11 // pred_region
          _
        $region32: #{bottleneck_forward.1} parent=11 // pred_fallthru
          _
        // Predicated region
        $region33: #{bottleneck_forward.1} parent=11 // pred_check
          %p312 = pneg %p172
        $region34: #{bottleneck_forward.1} parent=11 // pred_check_branch
          %314 = sbr.rel (%p312) target = $region36
        $region35: #{bottleneck_forward.1} parent=11 // pred_region
          _
        $region36: #{bottleneck_forward.1} parent=11 // pred_fallthru
          _
        // Predicated region
        $region37: #{bottleneck_forward.1} parent=11 // pred_check
          %p315 = pneg %p193
        $region38: #{bottleneck_forward.1} parent=11 // pred_check_branch
          %317 = sbr.rel (%p315) target = $region40
        $region39: #{bottleneck_forward.1} parent=11 // pred_region
          _
        $region40: #{bottleneck_forward.1} parent=11 // pred_fallthru
          _
        // Predicated region
        $region41: #{bottleneck_forward.1} parent=11 // pred_check
          %p318 = pneg %p214
        $region42: #{bottleneck_forward.1} parent=11 // pred_check_branch
          %320 = sbr.rel (%p318) target = $region44
        $region43: #{bottleneck_forward.1} parent=11 // pred_region
          _
        $region44: #{bottleneck_forward.1} parent=11 // pred_fallthru
          _
        // Predicated region
        $region45: #{bottleneck_forward.1} parent=11 // pred_check
          %p321 = pneg %p235
        $region46: #{bottleneck_forward.1} parent=11 // pred_check_branch
          %323 = sbr.rel (%p321) target = $region48
        $region47: #{bottleneck_forward.1} parent=11 // pred_region
          _
        $region48: #{bottleneck_forward.1} parent=11 // pred_fallthru
          _
        // Predicated region
        $region49: #{bottleneck_forward.1} parent=11 // pred_check
          %p324 = pneg %p256
        $region50: #{bottleneck_forward.1} parent=11 // pred_check_branch
          %326 = sbr.rel (%p324) target = $region52
        $region51: #{bottleneck_forward.1} parent=11 // pred_region
          _
        $region52: #{bottleneck_forward.1} parent=11 // pred_fallthru
          _
      $region12: #{bottleneck_forward.1} parent=5 // pred_fallthru
        _
      %p327 = scmp.lt.s32.totalorder %s20, 2
      // Predicated region
      $region53: #{bottleneck_forward.1} parent=5 // pred_check
        %p328 = pneg %p327
      $region54: #{bottleneck_forward.1} parent=5 // pred_check_branch
        %330 = sbr.rel (%p328) target = $region56
      $region55: #{bottleneck_forward.1} parent=5 // pred_region
        // Predicated region
        $region57: #{bottleneck_forward.1} parent=55 // pred_check
          %p331 = pneg %p40
        $region58: #{bottleneck_forward.1} parent=55 // pred_check_branch
          %333 = sbr.rel (%p331) target = $region60
        $region59: #{bottleneck_forward.1} parent=55 // pred_region
          %p334 = scmp.lt.s32.totalorder %s20, 1
          %s335 = scalar_select %p334, %s20, 1
          %s336 = smul.addr %s335, 8
          %s337 = smul.addr %s336, 4
          %s338 = scalar_lea.vmem %s0, %s337
        $region60: #{bottleneck_forward.1} parent=55 // pred_fallthru
          _
      $region56: #{bottleneck_forward.1} parent=5 // pred_fallthru
        _
      %p339 = scmp.le.s32.totalorder 1, %s20
      %p340 = scmp.lt.s32.totalorder %s20, 3
      %p341 = pnand %p339, %p340
      %p342 = pneg %p341
      // Predicated region
      $region61: #{bottleneck_forward.1} parent=5 // pred_check
        _
      $region62: #{bottleneck_forward.1} parent=5 // pred_check_branch
        %344 = sbr.rel (%p341) target = $region64
      $region63: #{bottleneck_forward.1} parent=5 // pred_region
        %s345 = ssub.s32 %s20, 1
        %p346 = scmp.lt.s32.totalorder %s25, 1
        %s347 = scalar_select %p346, %s25, 1
        %s348 = smul.addr %s347, 8
        %s349 = smul.addr %s348, 4
        %s350 = scalar_lea.vmem %s0, %s349
        %p351 = pneg %p46
        %p352 = pneg %p43
        %p353 = pneg %p67
        %p354 = pneg %p64
        %p355 = pneg %p88
        %p356 = pneg %p85
        %p357 = pneg %p109
        %p358 = pneg %p106
        %p359 = pneg %p130
        %p360 = pneg %p127
        %p361 = pneg %p151
        %p362 = pneg %p148
        %p363 = pneg %p172
        %p364 = pneg %p169
        %p365 = pneg %p193
        %p366 = pneg %p190
        %p367 = pneg %p214
        %p368 = pneg %p211
        %p369 = pneg %p235
        %p370 = pneg %p232
        %p371 = pneg %p256
        %p372 = pneg %p253
        %p373 = pneg %p282
        %p374 = pneg %p279
        %s375 = sand.u32 %s269, 1
        %s376 = scalar_lea.sflag [#allocation4], %s375
        %s377 = sand.u32 %s269, 1
        %s378 = smul.addr %s377, 64
        %s379 = scalar_lea.vmem [#allocation3], %s378
        %p380 = scmp.lt.s32.totalorder %s25, 1
        %s381 = scalar_select %p380, %s25, 1
        %s382 = smul.addr %s381, 8
        %s383 = smul.addr %s382, 4
        %s384 = scalar_lea.vmem %s0, %s383
        %v386 = vld [vmem:[%s384] sm:$0xf]
        %v387 = vld [vmem:[%s384 + $0x4] sm:$0xf]
        %v388 = vld [vmem:[%s384 + $0x8] sm:$0xf]
        %v389 = vld [vmem:[%s384 + $0xc] sm:$0xf]
        %v390 = vld [vmem:[%s384 + $0x10] sm:$0xf]
        %v391 = vld [vmem:[%s384 + $0x14] sm:$0xf]
        %v392 = vld [vmem:[%s384 + $0x18] sm:$0xf]
        %v393 = vld [vmem:[%s384 + $0x1c] sm:$0xf]
        %v394 = vld [vmem:[%s1] sm:$0xf]
        %v395 = vld [vmem:[%s1 + $0x4] sm:$0xf]
        %v396 = vld [vmem:[%s1 + $0x8] sm:$0xf]
        %v397 = vld [vmem:[%s1 + $0xc] sm:$0xf]
        %v398 = vld [vmem:[%s1 + $0x10] sm:$0xf]
        %v399 = vld [vmem:[%s1 + $0x14] sm:$0xf]
        %v400 = vld [vmem:[%s1 + $0x18] sm:$0xf]
        %v401 = vld [vmem:[%s1 + $0x1c] sm:$0xf]
        %v402 = vld [vmem:[%s1 + $0x20] sm:$0xf]
        %v403 = vld [vmem:[%s1 + $0x24] sm:$0xf]
        %v404 = vld [vmem:[%s1 + $0x28] sm:$0xf]
        %v405 = vld [vmem:[%s1 + $0x2c] sm:$0xf]
        %v406 = vld [vmem:[%s1 + $0x30] sm:$0xf]
        %v407 = vld [vmem:[%s1 + $0x34] sm:$0xf]
        %v408 = vld [vmem:[%s1 + $0x38] sm:$0xf]
        %v409 = vld [vmem:[%s1 + $0x3c] sm:$0xf]
        %v410 = vld [vmem:[%s2] sm:$0x1]
        %v412 = vlaneseq
        %v413 = vshrl.u32 %v412, 7
        %v414 = vsub.s32 0, %v413
        %v415 = vrot.slane %v410, %v414
        %v425 = vunpack.c.l.b16 %v386
        %v426 = vunpack.c.l.b16 %v387
        %v427 = vunpack.c.l.b16 %v388
        %v428 = vunpack.c.l.b16 %v389
        %v429 = vunpack.c.l.b16 %v390
        %v430 = vunpack.c.l.b16 %v391
        %v431 = vunpack.c.l.b16 %v392
        %v432 = vunpack.c.l.b16 %v393
        %v433 = vpack.c.b16 %v426, %v425
        %v434 = vpack.c.b16 %v428, %v427
        %v435 = vpack.c.b16 %v430, %v429
        %v436 = vpack.c.b16 %v432, %v431
        %v457 = vunpack.c.l.b16 %v394
        %v458 = vunpack.c.l.b16 %v395
        %v459 = vunpack.c.l.b16 %v396
        %v460 = vunpack.c.l.b16 %v397
        %v461 = vunpack.c.l.b16 %v398
        %v462 = vunpack.c.l.b16 %v399
        %v463 = vunpack.c.l.b16 %v400
        %v464 = vunpack.c.l.b16 %v401
        %v465 = vunpack.c.l.b16 %v402
        %v466 = vunpack.c.l.b16 %v403
        %v467 = vunpack.c.l.b16 %v404
        %v468 = vunpack.c.l.b16 %v405
        %v469 = vunpack.c.l.b16 %v406
        %v470 = vunpack.c.l.b16 %v407
        %v471 = vunpack.c.l.b16 %v408
        %v472 = vunpack.c.l.b16 %v409
        %v473 = vpack.c.b16 %v458, %v457
        %v474 = vpack.c.b16 %v460, %v459
        %v475 = vpack.c.b16 %v462, %v461
        %v476 = vpack.c.b16 %v464, %v463
        %v477 = vpack.c.b16 %v466, %v465
        %v478 = vpack.c.b16 %v468, %v467
        %v479 = vpack.c.b16 %v470, %v469
        %v480 = vpack.c.b16 %v472, %v471
        %489 = vmatprep.subr.bf16.mxu0 0
        %490 = vmatpush1.bf16.msra.mxu0 %v473
        %491 = vmatprep.subr.bf16.mxu0 0
        %492 = vmatpush1.bf16.msra.mxu0 %v474
        %493 = vmatprep.subr.bf16.mxu0 0
        %494 = vmatpush1.bf16.msra.mxu0 %v475
        %495 = vmatprep.subr.bf16.mxu0 0
        %496 = vmatpush1.bf16.msra.mxu0 %v476
        %497 = vmatprep.subr.bf16.mxu0 0
        %498 = vmatpush1.bf16.msra.mxu0 %v477
        %499 = vmatprep.subr.bf16.mxu0 0
        %500 = vmatpush1.bf16.msra.mxu0 %v478
        %501 = vmatprep.subr.bf16.mxu0 0
        %502 = vmatpush1.bf16.msra.mxu0 %v479
        %503 = vmatprep.subr.bf16.mxu0 0
        %504 = vmatpush1.bf16.msra.mxu0 %v480
        %505 = vmatprep.subr.bf16.mxu0 0
        %506 = vmatpush1.bf16.msra.mxu0 0
        %507 = vmatprep.subr.bf16.mxu0 0
        %508 = vmatpush1.bf16.msra.mxu0 0
        %509 = vmatprep.subr.bf16.mxu0 0
        %510 = vmatpush1.bf16.msra.mxu0 0
        %511 = vmatprep.subr.bf16.mxu0 0
        %512 = vmatpush1.bf16.msra.mxu0 0
        %513 = vmatprep.subr.bf16.mxu0 0
        %514 = vmatpush1.bf16.msra.mxu0 0
        %515 = vmatprep.subr.bf16.mxu0 0
        %516 = vmatpush1.bf16.msra.mxu0 0
        %517 = vmatprep.subr.bf16.mxu0 0
        %518 = vmatpush1.bf16.msra.mxu0 0
        %519 = vmatprep.subr.bf16.mxu0 0
        %520 = vmatpush1.bf16.msra.mxu0 0
        %521 = vmatprep.mubr.bf16.mxu0 0
        %522 = vmatmul.mubr.bf16.gmra.mrb[0].mxu0 %v433
        %v523 = vpop.f32.mrb[0].mxu0
        %v524 = vadd.f32 %v415, %v523
        %v525 = vpop.f32.mrb[0].mxu0
        %v526 = vpop.f32.mrb[0].mxu0
        %v527 = vadd.f32 %v415, %v526
        %v528 = vpop.f32.mrb[0].mxu0
        %529 = vmatprep.mubr.bf16.mxu0 0
        %530 = vmatmul.mubr.bf16.gmra.mrb[0].mxu0 %v434
        %v531 = vpop.f32.mrb[0].mxu0
        %v532 = vadd.f32 %v415, %v531
        %v533 = vpop.f32.mrb[0].mxu0
        %v534 = vpop.f32.mrb[0].mxu0
        %v535 = vadd.f32 %v415, %v534
        %v536 = vpop.f32.mrb[0].mxu0
        %537 = vmatprep.mubr.bf16.mxu0 0
        %538 = vmatmul.mubr.bf16.gmra.mrb[0].mxu0 %v435
        %v539 = vpop.f32.mrb[0].mxu0
        %v540 = vadd.f32 %v415, %v539
        %v541 = vpop.f32.mrb[0].mxu0
        %v542 = vpop.f32.mrb[0].mxu0
        %v543 = vadd.f32 %v415, %v542
        %v544 = vpop.f32.mrb[0].mxu0
        %545 = vmatprep.mubr.bf16.mxu0 0
        %546 = vmatmul.mubr.bf16.gmra.mrb[0].mxu0 %v436
        %v547 = vpop.f32.mrb[0].mxu0
        %v548 = vadd.f32 %v415, %v547
        %v549 = vpop.f32.mrb[0].mxu0
        %v550 = vpop.f32.mrb[0].mxu0
        %v551 = vadd.f32 %v415, %v550
        %v552 = vpop.f32.mrb[0].mxu0
        %553 = vdwg.mxu0
        %v554 = vmax.f32 %v524, 0.0
        %v555 = vmax.f32 %v527, 0.0
        %v556 = vmax.f32 %v532, 0.0
        %v557 = vmax.f32 %v535, 0.0
        %v558 = vmax.f32 %v540, 0.0
        %v559 = vmax.f32 %v543, 0.0
        %v560 = vmax.f32 %v548, 0.0
        %v561 = vmax.f32 %v551, 0.0
        %562 = vst [vmem:[#allocation2] sm:$0xff] 0.0
        %563 = vst [vmem:[#allocation2 + $0x8] sm:$0x3] 0.0
        %564 = vst [vmem:[#allocation2 + $0x10] sm:$0xff] 0.0
        %565 = vst [vmem:[#allocation2 + $0x18] sm:$0x3] 0.0
        %566 = vst [vmem:[#allocation2 + $0x20] sm:$0xff] 0.0
        %567 = vst [vmem:[#allocation2 + $0x28] sm:$0x3] 0.0
        %568 = vst [vmem:[#allocation2 + $0x30] sm:$0xff] 0.0
        %569 = vst [vmem:[#allocation2 + $0x38] sm:$0x3] 0.0
        %570 = vst [vmem:[#allocation2 + $0x40] sm:$0xff] 0.0
        %571 = vst [vmem:[#allocation2 + $0x48] sm:$0x3] 0.0
        %572 = vst [vmem:[#allocation2 + $0x50] sm:$0xff] 0.0
        %573 = vst [vmem:[#allocation2 + $0x58] sm:$0x3] 0.0
        %574 = vst [vmem:[#allocation2 + $0x60] sm:$0xff] 0.0
        %575 = vst [vmem:[#allocation2 + $0x68] sm:$0x3] 0.0
        %576 = vst [vmem:[#allocation2 + $0x70] sm:$0xff] 0.0
        %577 = vst [vmem:[#allocation2 + $0x78] sm:$0x3] 0.0
        %578 = vst [vmem:[#allocation2 + $0x80] sm:$0xff] 0.0
        %579 = vst [vmem:[#allocation2 + $0x88] sm:$0x3] 0.0
        %580 = vst [vmem:[#allocation2 + $0x90] sm:$0xff] 0.0
        %581 = vst [vmem:[#allocation2 + $0x98] sm:$0x3] 0.0
        %v582 = vpack.c.bf16 %v555, %v554
        %v583 = vpack.c.bf16 %v557, %v556
        %v584 = vpack.c.bf16 %v559, %v558
        %v585 = vpack.c.bf16 %v561, %v560
        %v586 = vunpack.c.l.bf16 %v582
        %v587 = vunpack.c.h.bf16 %v582
        %v588 = vunpack.c.l.bf16 %v583
        %v589 = vunpack.c.h.bf16 %v583
        %v590 = vunpack.c.l.bf16 %v584
        %v591 = vunpack.c.h.bf16 %v584
        %v592 = vunpack.c.l.bf16 %v585
        %v593 = vunpack.c.h.bf16 %v585
        %s594 = scalar_lea.vmem [#allocation2], 16
        %595 = vst [vmem:[%s594 + $0x1] sm:$0xff] %v586
        %596 = vst [vmem:[%s594 + $0x11] sm:$0xff] %v587
        %597 = vst [vmem:[%s594 + $0x21] sm:$0xff] %v588
        %598 = vst [vmem:[%s594 + $0x31] sm:$0xff] %v589
        %599 = vst [vmem:[%s594 + $0x41] sm:$0xff] %v590
        %600 = vst [vmem:[%s594 + $0x51] sm:$0xff] %v591
        %601 = vst [vmem:[%s594 + $0x61] sm:$0xff] %v592
        %602 = vst [vmem:[%s594 + $0x71] sm:$0xff] %v593
        %v603 = vld [vmem:[#allocation2] sm:$0xff]
        %v604 = vld [vmem:[#allocation2 + $0x10] sm:$0xff]
        %v605 = vld [vmem:[#allocation2 + $0x20] sm:$0xff]
        %v606 = vld [vmem:[#allocation2 + $0x30] sm:$0xff]
        %v607 = vld [vmem:[#allocation2 + $0x40] sm:$0xff]
        %v608 = vld [vmem:[#allocation2 + $0x50] sm:$0xff]
        %v609 = vld [vmem:[#allocation2 + $0x60] sm:$0xff]
        %v610 = vld [vmem:[#allocation2 + $0x70] sm:$0xff]
        %v611 = vld [vmem:[#allocation2 + $0x80] sm:$0xff]
        %v612 = vld [vmem:[#allocation2 + $0x90] sm:$0xff]
        %v613 = vpack.c.bf16 %v603, %v603
        %v614 = vpack.c.bf16 %v604, %v604
        %v615 = vpack.c.bf16 %v605, %v605
        %v616 = vpack.c.bf16 %v606, %v606
        %v617 = vpack.c.bf16 %v607, %v607
        %v618 = vpack.c.bf16 %v608, %v608
        %v619 = vpack.c.bf16 %v609, %v609
        %v620 = vpack.c.bf16 %v610, %v610
        %v621 = vpack.c.bf16 %v611, %v611
        %v622 = vpack.c.bf16 %v612, %v612
        %v623 = vld [vmem:[#allocation2 + $0x1] sm:$0xff]
        %v624 = vld [vmem:[#allocation2 + $0x11] sm:$0xff]
        %v625 = vld [vmem:[#allocation2 + $0x21] sm:$0xff]
        %v626 = vld [vmem:[#allocation2 + $0x31] sm:$0xff]
        %v627 = vld [vmem:[#allocation2 + $0x41] sm:$0xff]
        %v628 = vld [vmem:[#allocation2 + $0x51] sm:$0xff]
        %v629 = vld [vmem:[#allocation2 + $0x61] sm:$0xff]
        %v630 = vld [vmem:[#allocation2 + $0x71] sm:$0xff]
        %v631 = vld [vmem:[#allocation2 + $0x81] sm:$0xff]
        %v632 = vld [vmem:[#allocation2 + $0x91] sm:$0xff]
        %v633 = vpack.c.bf16 %v623, %v623
        %v634 = vpack.c.bf16 %v624, %v624
        %v635 = vpack.c.bf16 %v625, %v625
        %v636 = vpack.c.bf16 %v626, %v626
        %v637 = vpack.c.bf16 %v627, %v627
        %v638 = vpack.c.bf16 %v628, %v628
        %v639 = vpack.c.bf16 %v629, %v629
        %v640 = vpack.c.bf16 %v630, %v630
        %v641 = vpack.c.bf16 %v631, %v631
        %v642 = vpack.c.bf16 %v632, %v632
        %v643 = vld [vmem:[#allocation2 + $0x2] sm:$0xff]
        %v644 = vld [vmem:[#allocation2 + $0x12] sm:$0xff]
        %v645 = vld [vmem:[#allocation2 + $0x22] sm:$0xff]
        %v646 = vld [vmem:[#allocation2 + $0x32] sm:$0xff]
        %v647 = vld [vmem:[#allocation2 + $0x42] sm:$0xff]
        %v648 = vld [vmem:[#allocation2 + $0x52] sm:$0xff]
        %v649 = vld [vmem:[#allocation2 + $0x62] sm:$0xff]
        %v650 = vld [vmem:[#allocation2 + $0x72] sm:$0xff]
        %v651 = vld [vmem:[#allocation2 + $0x82] sm:$0xff]
        %v652 = vld [vmem:[#allocation2 + $0x92] sm:$0xff]
        %v653 = vpack.c.bf16 %v643, %v643
        %v654 = vpack.c.bf16 %v644, %v644
        %v655 = vpack.c.bf16 %v645, %v645
        %v656 = vpack.c.bf16 %v646, %v646
        %v657 = vpack.c.bf16 %v647, %v647
        %v658 = vpack.c.bf16 %v648, %v648
        %v659 = vpack.c.bf16 %v649, %v649
        %v660 = vpack.c.bf16 %v650, %v650
        %v661 = vpack.c.bf16 %v651, %v651
        %v662 = vpack.c.bf16 %v652, %v652
        %v663 = vld [vmem:[%s3] sm:$0xf]
        %v664 = vld [vmem:[%s3 + $0x4] sm:$0xf]
        %v665 = vld [vmem:[%s3 + $0x8] sm:$0xf]
        %v666 = vld [vmem:[%s3 + $0xc] sm:$0xf]
        %v667 = vld [vmem:[%s3 + $0x10] sm:$0xf]
        %v668 = vld [vmem:[%s3 + $0x14] sm:$0xf]
        %v669 = vld [vmem:[%s3 + $0x18] sm:$0xf]
        %v670 = vld [vmem:[%s3 + $0x1c] sm:$0xf]
        %v671 = vld [vmem:[%s3 + $0x20] sm:$0xf]
        %v672 = vld [vmem:[%s3 + $0x24] sm:$0xf]
        %v673 = vld [vmem:[%s3 + $0x28] sm:$0xf]
        %v674 = vld [vmem:[%s3 + $0x2c] sm:$0xf]
        %v675 = vld [vmem:[%s3 + $0x30] sm:$0xf]
        %v676 = vld [vmem:[%s3 + $0x34] sm:$0xf]
        %v677 = vld [vmem:[%s3 + $0x38] sm:$0xf]
        %v678 = vld [vmem:[%s3 + $0x3c] sm:$0xf]
        %s679 = scalar_lea.vmem %s3, 64
        %v680 = vld [vmem:[%s679] sm:$0xf]
        %v681 = vld [vmem:[%s679 + $0x4] sm:$0xf]
        %v682 = vld [vmem:[%s679 + $0x8] sm:$0xf]
        %v683 = vld [vmem:[%s679 + $0xc] sm:$0xf]
        %v684 = vld [vmem:[%s679 + $0x10] sm:$0xf]
        %v685 = vld [vmem:[%s679 + $0x14] sm:$0xf]
        %v686 = vld [vmem:[%s679 + $0x18] sm:$0xf]
        %v687 = vld [vmem:[%s679 + $0x1c] sm:$0xf]
        %v688 = vld [vmem:[%s679 + $0x20] sm:$0xf]
        %v689 = vld [vmem:[%s679 + $0x24] sm:$0xf]
        %v690 = vld [vmem:[%s679 + $0x28] sm:$0xf]
        %v691 = vld [vmem:[%s679 + $0x2c] sm:$0xf]
        %v692 = vld [vmem:[%s679 + $0x30] sm:$0xf]
        %v693 = vld [vmem:[%s679 + $0x34] sm:$0xf]
        %v694 = vld [vmem:[%s679 + $0x38] sm:$0xf]
        %v695 = vld [vmem:[%s679 + $0x3c] sm:$0xf]
        %v704 = vunpack.c.l.b16 %v633
        %v705 = vunpack.c.l.b16 %v634
        %v706 = vunpack.c.l.b16 %v635
        %v707 = vunpack.c.l.b16 %v636
        %v708 = vunpack.c.l.b16 %v637
        %v709 = vunpack.c.l.b16 %v638
        %v710 = vunpack.c.l.b16 %v639
        %v711 = vunpack.c.l.b16 %v640
        %v712 = vpack.c.b16 %v705, %v704
        %v713 = vpack.c.b16 %v707, %v706
        %v714 = vpack.c.b16 %v709, %v708
        %v715 = vpack.c.b16 %v711, %v710
        %v736 = vunpack.c.l.b16 %v680
        %v737 = vunpack.c.l.b16 %v681
        %v738 = vunpack.c.l.b16 %v682
        %v739 = vunpack.c.l.b16 %v683
        %v740 = vunpack.c.l.b16 %v684
        %v741 = vunpack.c.l.b16 %v685
        %v742 = vunpack.c.l.b16 %v686
        %v743 = vunpack.c.l.b16 %v687
        %v744 = vunpack.c.l.b16 %v688
        %v745 = vunpack.c.l.b16 %v689
        %v746 = vunpack.c.l.b16 %v690
        %v747 = vunpack.c.l.b16 %v691
        %v748 = vunpack.c.l.b16 %v692
        %v749 = vunpack.c.l.b16 %v693
        %v750 = vunpack.c.l.b16 %v694
        %v751 = vunpack.c.l.b16 %v695
        %v752 = vpack.c.b16 %v737, %v736
        %v753 = vpack.c.b16 %v739, %v738
        %v754 = vpack.c.b16 %v741, %v740
        %v755 = vpack.c.b16 %v743, %v742
        %v756 = vpack.c.b16 %v745, %v744
        %v757 = vpack.c.b16 %v747, %v746
        %v758 = vpack.c.b16 %v749, %v748
        %v759 = vpack.c.b16 %v751, %v750
        %768 = vmatprep.subr.bf16.mxu0 0
        %769 = vmatpush1.bf16.msra.mxu0 %v752
        %770 = vmatprep.subr.bf16.mxu0 0
        %771 = vmatpush1.bf16.msra.mxu0 %v753
        %772 = vmatprep.subr.bf16.mxu0 0
        %773 = vmatpush1.bf16.msra.mxu0 %v754
        %774 = vmatprep.subr.bf16.mxu0 0
        %775 = vmatpush1.bf16.msra.mxu0 %v755
        %776 = vmatprep.subr.bf16.mxu0 0
        %777 = vmatpush1.bf16.msra.mxu0 %v756
        %778 = vmatprep.subr.bf16.mxu0 0
        %779 = vmatpush1.bf16.msra.mxu0 %v757
        %780 = vmatprep.subr.bf16.mxu0 0
        %781 = vmatpush1.bf16.msra.mxu0 %v758
        %782 = vmatprep.subr.bf16.mxu0 0
        %783 = vmatpush1.bf16.msra.mxu0 %v759
        %784 = vmatprep.subr.bf16.mxu0 0
        %785 = vmatpush1.bf16.msra.mxu0 0
        %786 = vmatprep.subr.bf16.mxu0 0
        %787 = vmatpush1.bf16.msra.mxu0 0
        %788 = vmatprep.subr.bf16.mxu0 0
        %789 = vmatpush1.bf16.msra.mxu0 0
        %790 = vmatprep.subr.bf16.mxu0 0
        %791 = vmatpush1.bf16.msra.mxu0 0
        %792 = vmatprep.subr.bf16.mxu0 0
        %793 = vmatpush1.bf16.msra.mxu0 0
        %794 = vmatprep.subr.bf16.mxu0 0
        %795 = vmatpush1.bf16.msra.mxu0 0
        %796 = vmatprep.subr.bf16.mxu0 0
        %797 = vmatpush1.bf16.msra.mxu0 0
        %798 = vmatprep.subr.bf16.mxu0 0
        %799 = vmatpush1.bf16.msra.mxu0 0
        %800 = vmatprep.mubr.bf16.mxu0 0
        %801 = vmatmul.mubr.bf16.gmra.mrb[0].mxu0 %v712
        %v802 = vpop.f32.mrb[0].mxu0
        %v803 = vadd.f32 0.0, %v802
        %v804 = vpop.f32.mrb[0].mxu0
        %v805 = vpop.f32.mrb[0].mxu0
        %v806 = vadd.f32 0.0, %v805
        %v807 = vpop.f32.mrb[0].mxu0
        %808 = vmatprep.mubr.bf16.mxu0 0
        %809 = vmatmul.mubr.bf16.gmra.mrb[0].mxu0 %v713
        %v810 = vpop.f32.mrb[0].mxu0
        %v811 = vadd.f32 0.0, %v810
        %v812 = vpop.f32.mrb[0].mxu0
        %v813 = vpop.f32.mrb[0].mxu0
        %v814 = vadd.f32 0.0, %v813
        %v815 = vpop.f32.mrb[0].mxu0
        %816 = vmatprep.mubr.bf16.mxu0 0
        %817 = vmatmul.mubr.bf16.gmra.mrb[0].mxu0 %v714
        %v818 = vpop.f32.mrb[0].mxu0
        %v819 = vadd.f32 0.0, %v818
        %v820 = vpop.f32.mrb[0].mxu0
        %v821 = vpop.f32.mrb[0].mxu0
        %v822 = vadd.f32 0.0, %v821
        %v823 = vpop.f32.mrb[0].mxu0
        %824 = vmatprep.mubr.bf16.mxu0 0
        %825 = vmatmul.mubr.bf16.gmra.mrb[0].mxu0 %v715
        %v826 = vpop.f32.mrb[0].mxu0
        %v827 = vadd.f32 0.0, %v826
        %v828 = vpop.f32.mrb[0].mxu0
        %v829 = vpop.f32.mrb[0].mxu0
        %v830 = vadd.f32 0.0, %v829
        %v831 = vpop.f32.mrb[0].mxu0
        %832 = vdwg.mxu0
        %v841 = vunpack.c.l.b16 %v613
        %v842 = vunpack.c.l.b16 %v614
        %v843 = vunpack.c.l.b16 %v615
        %v844 = vunpack.c.l.b16 %v616
        %v845 = vunpack.c.l.b16 %v617
        %v846 = vunpack.c.l.b16 %v618
        %v847 = vunpack.c.l.b16 %v619
        %v848 = vunpack.c.l.b16 %v620
        %v849 = vpack.c.b16 %v842, %v841
        %v850 = vpack.c.b16 %v844, %v843
        %v851 = vpack.c.b16 %v846, %v845
        %v852 = vpack.c.b16 %v848, %v847
        %v873 = vunpack.c.l.b16 %v663
        %v874 = vunpack.c.l.b16 %v664
        %v875 = vunpack.c.l.b16 %v665
        %v876 = vunpack.c.l.b16 %v666
        %v877 = vunpack.c.l.b16 %v667
        %v878 = vunpack.c.l.b16 %v668
        %v879 = vunpack.c.l.b16 %v669
        %v880 = vunpack.c.l.b16 %v670
        %v881 = vunpack.c.l.b16 %v671
        %v882 = vunpack.c.l.b16 %v672
        %v883 = vunpack.c.l.b16 %v673
        %v884 = vunpack.c.l.b16 %v674
        %v885 = vunpack.c.l.b16 %v675
        %v886 = vunpack.c.l.b16 %v676
        %v887 = vunpack.c.l.b16 %v677
        %v888 = vunpack.c.l.b16 %v678
        %v889 = vpack.c.b16 %v874, %v873
        %v890 = vpack.c.b16 %v876, %v875
        %v891 = vpack.c.b16 %v878, %v877
        %v892 = vpack.c.b16 %v880, %v879
        %v893 = vpack.c.b16 %v882, %v881
        %v894 = vpack.c.b16 %v884, %v883
        %v895 = vpack.c.b16 %v886, %v885
        %v896 = vpack.c.b16 %v888, %v887
        %905 = vmatprep.subr.bf16.mxu0 0
        %906 = vmatpush1.bf16.msra.mxu0 %v889
        %907 = vmatprep.subr.bf16.mxu0 0
        %908 = vmatpush1.bf16.msra.mxu0 %v890
        %909 = vmatprep.subr.bf16.mxu0 0
        %910 = vmatpush1.bf16.msra.mxu0 %v891
        %911 = vmatprep.subr.bf16.mxu0 0
        %912 = vmatpush1.bf16.msra.mxu0 %v892
        %913 = vmatprep.subr.bf16.mxu0 0
        %914 = vmatpush1.bf16.msra.mxu0 %v893
        %915 = vmatprep.subr.bf16.mxu0 0
        %916 = vmatpush1.bf16.msra.mxu0 %v894
        %917 = vmatprep.subr.bf16.mxu0 0
        %918 = vmatpush1.bf16.msra.mxu0 %v895
        %919 = vmatprep.subr.bf16.mxu0 0
        %920 = vmatpush1.bf16.msra.mxu0 %v896
        %921 = vmatprep.subr.bf16.mxu0 0
        %922 = vmatpush1.bf16.msra.mxu0 0
        %923 = vmatprep.subr.bf16.mxu0 0
        %924 = vmatpush1.bf16.msra.mxu0 0
        %925 = vmatprep.subr.bf16.mxu0 0
        %926 = vmatpush1.bf16.msra.mxu0 0
        %927 = vmatprep.subr.bf16.mxu0 0
        %928 = vmatpush1.bf16.msra.mxu0 0
        %929 = vmatprep.subr.bf16.mxu0 0
        %930 = vmatpush1.bf16.msra.mxu0 0
        %931 = vmatprep.subr.bf16.mxu0 0
        %932 = vmatpush1.bf16.msra.mxu0 0
        %933 = vmatprep.subr.bf16.mxu0 0
        %934 = vmatpush1.bf16.msra.mxu0 0
        %935 = vmatprep.subr.bf16.mxu0 0
        %936 = vmatpush1.bf16.msra.mxu0 0
        %937 = vmatprep.mubr.bf16.mxu0 0
        %938 = vmatmul.mubr.bf16.gmra.mrb[0].mxu0 %v849
        %v939 = vpop.f32.mrb[0].mxu0
        %v940 = vadd.f32 %v803, %v939
        %v941 = vpop.f32.mrb[0].mxu0
        %v942 = vpop.f32.mrb[0].mxu0
        %v943 = vadd.f32 %v806, %v942
        %v944 = vpop.f32.mrb[0].mxu0
        %945 = vmatprep.mubr.bf16.mxu0 0
        %946 = vmatmul.mubr.bf16.gmra.mrb[0].mxu0 %v850
        %v947 = vpop.f32.mrb[0].mxu0
        %v948 = vadd.f32 %v811, %v947
        %v949 = vpop.f32.mrb[0].mxu0
        %v950 = vpop.f32.mrb[0].mxu0
        %v951 = vadd.f32 %v814, %v950
        %v952 = vpop.f32.mrb[0].mxu0
        %953 = vmatprep.mubr.bf16.mxu0 0
        %954 = vmatmul.mubr.bf16.gmra.mrb[0].mxu0 %v851
        %v955 = vpop.f32.mrb[0].mxu0
        %v956 = vadd.f32 %v819, %v955
        %v957 = vpop.f32.mrb[0].mxu0
        %v958 = vpop.f32.mrb[0].mxu0
        %v959 = vadd.f32 %v822, %v958
        %v960 = vpop.f32.mrb[0].mxu0
        %961 = vmatprep.mubr.bf16.mxu0 0
        %962 = vmatmul.mubr.bf16.gmra.mrb[0].mxu0 %v852
        %v963 = vpop.f32.mrb[0].mxu0
        %v964 = vadd.f32 %v827, %v963
        %v965 = vpop.f32.mrb[0].mxu0
        %v966 = vpop.f32.mrb[0].mxu0
        %v967 = vadd.f32 %v830, %v966
        %v968 = vpop.f32.mrb[0].mxu0
        %969 = vdwg.mxu0
        %s970 = scalar_lea.vmem %s3, 128
        %v971 = vld [vmem:[%s970] sm:$0xf]
        %v972 = vld [vmem:[%s970 + $0x4] sm:$0xf]
        %v973 = vld [vmem:[%s970 + $0x8] sm:$0xf]
        %v974 = vld [vmem:[%s970 + $0xc] sm:$0xf]
        %v975 = vld [vmem:[%s970 + $0x10] sm:$0xf]
        %v976 = vld [vmem:[%s970 + $0x14] sm:$0xf]
        %v977 = vld [vmem:[%s970 + $0x18] sm:$0xf]
        %v978 = vld [vmem:[%s970 + $0x1c] sm:$0xf]
        %v979 = vld [vmem:[%s970 + $0x20] sm:$0xf]
        %v980 = vld [vmem:[%s970 + $0x24] sm:$0xf]
        %v981 = vld [vmem:[%s970 + $0x28] sm:$0xf]
        %v982 = vld [vmem:[%s970 + $0x2c] sm:$0xf]
        %v983 = vld [vmem:[%s970 + $0x30] sm:$0xf]
        %v984 = vld [vmem:[%s970 + $0x34] sm:$0xf]
        %v985 = vld [vmem:[%s970 + $0x38] sm:$0xf]
        %v986 = vld [vmem:[%s970 + $0x3c] sm:$0xf]
        %v995 = vunpack.c.l.b16 %v653
        %v996 = vunpack.c.l.b16 %v654
        %v997 = vunpack.c.l.b16 %v655
        %v998 = vunpack.c.l.b16 %v656
        %v999 = vunpack.c.l.b16 %v657
        %v1000 = vunpack.c.l.b16 %v658
        %v1001 = vunpack.c.l.b16 %v659
        %v1002 = vunpack.c.l.b16 %v660
        %v1003 = vpack.c.b16 %v996, %v995
        %v1004 = vpack.c.b16 %v998, %v997
        %v1005 = vpack.c.b16 %v1000, %v999
        %v1006 = vpack.c.b16 %v1002, %v1001
        %v1027 = vunpack.c.l.b16 %v971
        %v1028 = vunpack.c.l.b16 %v972
        %v1029 = vunpack.c.l.b16 %v973
        %v1030 = vunpack.c.l.b16 %v974
        %v1031 = vunpack.c.l.b16 %v975
        %v1032 = vunpack.c.l.b16 %v976
        %v1033 = vunpack.c.l.b16 %v977
        %v1034 = vunpack.c.l.b16 %v978
        %v1035 = vunpack.c.l.b16 %v979
        %v1036 = vunpack.c.l.b16 %v980
        %v1037 = vunpack.c.l.b16 %v981
        %v1038 = vunpack.c.l.b16 %v982
        %v1039 = vunpack.c.l.b16 %v983
        %v1040 = vunpack.c.l.b16 %v984
        %v1041 = vunpack.c.l.b16 %v985
        %v1042 = vunpack.c.l.b16 %v986
        %v1043 = vpack.c.b16 %v1028, %v1027
        %v1044 = vpack.c.b16 %v1030, %v1029
        %v1045 = vpack.c.b16 %v1032, %v1031
        %v1046 = vpack.c.b16 %v1034, %v1033
        %v1047 = vpack.c.b16 %v1036, %v1035
        %v1048 = vpack.c.b16 %v1038, %v1037
        %v1049 = vpack.c.b16 %v1040, %v1039
        %v1050 = vpack.c.b16 %v1042, %v1041
        %1059 = vmatprep.subr.bf16.mxu0 0
        %1060 = vmatpush1.bf16.msra.mxu0 %v1043
        %1061 = vmatprep.subr.bf16.mxu0 0
        %1062 = vmatpush1.bf16.msra.mxu0 %v1044
        %1063 = vmatprep.subr.bf16.mxu0 0
        %1064 = vmatpush1.bf16.msra.mxu0 %v1045
        %1065 = vmatprep.subr.bf16.mxu0 0
        %1066 = vmatpush1.bf16.msra.mxu0 %v1046
        %1067 = vmatprep.subr.bf16.mxu0 0
        %1068 = vmatpush1.bf16.msra.mxu0 %v1047
        %1069 = vmatprep.subr.bf16.mxu0 0
        %1070 = vmatpush1.bf16.msra.mxu0 %v1048
        %1071 = vmatprep.subr.bf16.mxu0 0
        %1072 = vmatpush1.bf16.msra.mxu0 %v1049
        %1073 = vmatprep.subr.bf16.mxu0 0
        %1074 = vmatpush1.bf16.msra.mxu0 %v1050
        %1075 = vmatprep.subr.bf16.mxu0 0
        %1076 = vmatpush1.bf16.msra.mxu0 0
        %1077 = vmatprep.subr.bf16.mxu0 0
        %1078 = vmatpush1.bf16.msra.mxu0 0
        %1079 = vmatprep.subr.bf16.mxu0 0
        %1080 = vmatpush1.bf16.msra.mxu0 0
        %1081 = vmatprep.subr.bf16.mxu0 0
        %1082 = vmatpush1.bf16.msra.mxu0 0
        %1083 = vmatprep.subr.bf16.mxu0 0
        %1084 = vmatpush1.bf16.msra.mxu0 0
        %1085 = vmatprep.subr.bf16.mxu0 0
        %1086 = vmatpush1.bf16.msra.mxu0 0
        %1087 = vmatprep.subr.bf16.mxu0 0
        %1088 = vmatpush1.bf16.msra.mxu0 0
        %1089 = vmatprep.subr.bf16.mxu0 0
        %1090 = vmatpush1.bf16.msra.mxu0 0
        %1091 = vmatprep.mubr.bf16.mxu0 0
        %1092 = vmatmul.mubr.bf16.gmra.mrb[0].mxu0 %v1003
        %v1093 = vpop.f32.mrb[0].mxu0
        %v1094 = vadd.f32 0.0, %v1093
        %v1095 = vpop.f32.mrb[0].mxu0
        %v1096 = vpop.f32.mrb[0].mxu0
        %v1097 = vadd.f32 0.0, %v1096
        %v1098 = vpop.f32.mrb[0].mxu0
        %1099 = vmatprep.mubr.bf16.mxu0 0
        %1100 = vmatmul.mubr.bf16.gmra.mrb[0].mxu0 %v1004
        %v1101 = vpop.f32.mrb[0].mxu0
        %v1102 = vadd.f32 0.0, %v1101
        %v1103 = vpop.f32.mrb[0].mxu0
        %v1104 = vpop.f32.mrb[0].mxu0
        %v1105 = vadd.f32 0.0, %v1104
        %v1106 = vpop.f32.mrb[0].mxu0
        %1107 = vmatprep.mubr.bf16.mxu0 0
        %1108 = vmatmul.mubr.bf16.gmra.mrb[0].mxu0 %v1005
        %v1109 = vpop.f32.mrb[0].mxu0
        %v1110 = vadd.f32 0.0, %v1109
        %v1111 = vpop.f32.mrb[0].mxu0
        %v1112 = vpop.f32.mrb[0].mxu0
        %v1113 = vadd.f32 0.0, %v1112
        %v1114 = vpop.f32.mrb[0].mxu0
        %1115 = vmatprep.mubr.bf16.mxu0 0
        %1116 = vmatmul.mubr.bf16.gmra.mrb[0].mxu0 %v1006
        %v1117 = vpop.f32.mrb[0].mxu0
        %v1118 = vadd.f32 0.0, %v1117
        %v1119 = vpop.f32.mrb[0].mxu0
        %v1120 = vpop.f32.mrb[0].mxu0
        %v1121 = vadd.f32 0.0, %v1120
        %v1122 = vpop.f32.mrb[0].mxu0
        %1123 = vdwg.mxu0
        %v1124 = vadd.f32 %v940, %v1094
        %v1125 = vadd.f32 %v943, %v1097
        %v1126 = vadd.f32 %v948, %v1102
        %v1127 = vadd.f32 %v951, %v1105
        %v1128 = vadd.f32 %v956, %v1110
        %v1129 = vadd.f32 %v959, %v1113
        %v1130 = vadd.f32 %v964, %v1118
        %v1131 = vadd.f32 %v967, %v1121
        %s1132 = scalar_lea.vmem %s3, 192
        %v1133 = vld [vmem:[%s1132] sm:$0xf]
        %v1134 = vld [vmem:[%s1132 + $0x4] sm:$0xf]
        %v1135 = vld [vmem:[%s1132 + $0x8] sm:$0xf]
        %v1136 = vld [vmem:[%s1132 + $0xc] sm:$0xf]
        %v1137 = vld [vmem:[%s1132 + $0x10] sm:$0xf]
        %v1138 = vld [vmem:[%s1132 + $0x14] sm:$0xf]
        %v1139 = vld [vmem:[%s1132 + $0x18] sm:$0xf]
        %v1140 = vld [vmem:[%s1132 + $0x1c] sm:$0xf]
        %v1141 = vld [vmem:[%s1132 + $0x20] sm:$0xf]
        %v1142 = vld [vmem:[%s1132 + $0x24] sm:$0xf]
        %v1143 = vld [vmem:[%s1132 + $0x28] sm:$0xf]
        %v1144 = vld [vmem:[%s1132 + $0x2c] sm:$0xf]
        %v1145 = vld [vmem:[%s1132 + $0x30] sm:$0xf]
        %v1146 = vld [vmem:[%s1132 + $0x34] sm:$0xf]
        %v1147 = vld [vmem:[%s1132 + $0x38] sm:$0xf]
        %v1148 = vld [vmem:[%s1132 + $0x3c] sm:$0xf]
        %v1150 = vunpack.c.l.b16 %v621
        %v1151 = vpack.c.b16 %v843, %v842
        %v1152 = vpack.c.b16 %v845, %v844
        %v1153 = vpack.c.b16 %v847, %v846
        %v1154 = vpack.c.b16 %v1150, %v848
        %v1175 = vunpack.c.l.b16 %v1133
        %v1176 = vunpack.c.l.b16 %v1134
        %v1177 = vunpack.c.l.b16 %v1135
        %v1178 = vunpack.c.l.b16 %v1136
        %v1179 = vunpack.c.l.b16 %v1137
        %v1180 = vunpack.c.l.b16 %v1138
        %v1181 = vunpack.c.l.b16 %v1139
        %v1182 = vunpack.c.l.b16 %v1140
        %v1183 = vunpack.c.l.b16 %v1141
        %v1184 = vunpack.c.l.b16 %v1142
        %v1185 = vunpack.c.l.b16 %v1143
        %v1186 = vunpack.c.l.b16 %v1144
        %v1187 = vunpack.c.l.b16 %v1145
        %v1188 = vunpack.c.l.b16 %v1146
        %v1189 = vunpack.c.l.b16 %v1147
        %v1190 = vunpack.c.l.b16 %v1148
        %v1191 = vpack.c.b16 %v1176, %v1175
        %v1192 = vpack.c.b16 %v1178, %v1177
        %v1193 = vpack.c.b16 %v1180, %v1179
        %v1194 = vpack.c.b16 %v1182, %v1181
        %v1195 = vpack.c.b16 %v1184, %v1183
        %v1196 = vpack.c.b16 %v1186, %v1185
        %v1197 = vpack.c.b16 %v1188, %v1187
        %v1198 = vpack.c.b16 %v1190, %v1189
        %1207 = vmatprep.subr.bf16.mxu0 0
        %1208 = vmatpush1.bf16.msra.mxu0 %v1191
        %1209 = vmatprep.subr.bf16.mxu0 0
        %1210 = vmatpush1.bf16.msra.mxu0 %v1192
        %1211 = vmatprep.subr.bf16.mxu0 0
        %1212 = vmatpush1.bf16.msra.mxu0 %v1193
        %1213 = vmatprep.subr.bf16.mxu0 0
        %1214 = vmatpush1.bf16.msra.mxu0 %v1194
        %1215 = vmatprep.subr.bf16.mxu0 0
        %1216 = vmatpush1.bf16.msra.mxu0 %v1195
        %1217 = vmatprep.subr.bf16.mxu0 0
        %1218 = vmatpush1.bf16.msra.mxu0 %v1196
        %1219 = vmatprep.subr.bf16.mxu0 0
        %1220 = vmatpush1.bf16.msra.mxu0 %v1197
        %1221 = vmatprep.subr.bf16.mxu0 0
        %1222 = vmatpush1.bf16.msra.mxu0 %v1198
        %1223 = vmatprep.subr.bf16.mxu0 0
        %1224 = vmatpush1.bf16.msra.mxu0 0
        %1225 = vmatprep.subr.bf16.mxu0 0
        %1226 = vmatpush1.bf16.msra.mxu0 0
        %1227 = vmatprep.subr.bf16.mxu0 0
        %1228 = vmatpush1.bf16.msra.mxu0 0
        %1229 = vmatprep.subr.bf16.mxu0 0
        %1230 = vmatpush1.bf16.msra.mxu0 0
        %1231 = vmatprep.subr.bf16.mxu0 0
        %1232 = vmatpush1.bf16.msra.mxu0 0
        %1233 = vmatprep.subr.bf16.mxu0 0
        %1234 = vmatpush1.bf16.msra.mxu0 0
        %1235 = vmatprep.subr.bf16.mxu0 0
        %1236 = vmatpush1.bf16.msra.mxu0 0
        %1237 = vmatprep.subr.bf16.mxu0 0
        %1238 = vmatpush1.bf16.msra.mxu0 0
        %1239 = vmatprep.mubr.bf16.mxu0 0
        %1240 = vmatmul.mubr.bf16.gmra.mrb[0].mxu0 %v1151
        %v1241 = vpop.f32.mrb[0].mxu0
        %v1242 = vadd.f32 0.0, %v1241
        %v1243 = vpop.f32.mrb[0].mxu0
        %v1244 = vpop.f32.mrb[0].mxu0
        %v1245 = vadd.f32 0.0, %v1244
        %v1246 = vpop.f32.mrb[0].mxu0
        %1247 = vmatprep.mubr.bf16.mxu0 0
        %1248 = vmatmul.mubr.bf16.gmra.mrb[0].mxu0 %v1152
        %v1249 = vpop.f32.mrb[0].mxu0
        %v1250 = vadd.f32 0.0, %v1249
        %v1251 = vpop.f32.mrb[0].mxu0
        %v1252 = vpop.f32.mrb[0].mxu0
        %v1253 = vadd.f32 0.0, %v1252
        %v1254 = vpop.f32.mrb[0].mxu0
        %1255 = vmatprep.mubr.bf16.mxu0 0
        %1256 = vmatmul.mubr.bf16.gmra.mrb[0].mxu0 %v1153
        %v1257 = vpop.f32.mrb[0].mxu0
        %v1258 = vadd.f32 0.0, %v1257
        %v1259 = vpop.f32.mrb[0].mxu0
        %v1260 = vpop.f32.mrb[0].mxu0
        %v1261 = vadd.f32 0.0, %v1260
        %v1262 = vpop.f32.mrb[0].mxu0
        %1263 = vmatprep.mubr.bf16.mxu0 0
        %1264 = vmatmul.mubr.bf16.gmra.mrb[0].mxu0 %v1154
        %v1265 = vpop.f32.mrb[0].mxu0
        %v1266 = vadd.f32 0.0, %v1265
        %v1267 = vpop.f32.mrb[0].mxu0
        %v1268 = vpop.f32.mrb[0].mxu0
        %v1269 = vadd.f32 0.0, %v1268
        %v1270 = vpop.f32.mrb[0].mxu0
        %1271 = vdwg.mxu0
        %v1272 = vadd.f32 %v1124, %v1242
        %v1273 = vadd.f32 %v1125, %v1245
        %v1274 = vadd.f32 %v1126, %v1250
        %v1275 = vadd.f32 %v1127, %v1253
        %v1276 = vadd.f32 %v1128, %v1258
        %v1277 = vadd.f32 %v1129, %v1261
        %v1278 = vadd.f32 %v1130, %v1266
        %v1279 = vadd.f32 %v1131, %v1269
        %s1280 = scalar_lea.vmem %s3, 256
        %v1281 = vld [vmem:[%s1280] sm:$0xf]
        %v1282 = vld [vmem:[%s1280 + $0x4] sm:$0xf]
        %v1283 = vld [vmem:[%s1280 + $0x8] sm:$0xf]
        %v1284 = vld [vmem:[%s1280 + $0xc] sm:$0xf]
        %v1285 = vld [vmem:[%s1280 + $0x10] sm:$0xf]
        %v1286 = vld [vmem:[%s1280 + $0x14] sm:$0xf]
        %v1287 = vld [vmem:[%s1280 + $0x18] sm:$0xf]
        %v1288 = vld [vmem:[%s1280 + $0x1c] sm:$0xf]
        %v1289 = vld [vmem:[%s1280 + $0x20] sm:$0xf]
        %v1290 = vld [vmem:[%s1280 + $0x24] sm:$0xf]
        %v1291 = vld [vmem:[%s1280 + $0x28] sm:$0xf]
        %v1292 = vld [vmem:[%s1280 + $0x2c] sm:$0xf]
        %v1293 = vld [vmem:[%s1280 + $0x30] sm:$0xf]
        %v1294 = vld [vmem:[%s1280 + $0x34] sm:$0xf]
        %v1295 = vld [vmem:[%s1280 + $0x38] sm:$0xf]
        %v1296 = vld [vmem:[%s1280 + $0x3c] sm:$0xf]
        %v1298 = vunpack.c.l.b16 %v641
        %v1299 = vpack.c.b16 %v706, %v705
        %v1300 = vpack.c.b16 %v708, %v707
        %v1301 = vpack.c.b16 %v710, %v709
        %v1302 = vpack.c.b16 %v1298, %v711
        %v1323 = vunpack.c.l.b16 %v1281
        %v1324 = vunpack.c.l.b16 %v1282
        %v1325 = vunpack.c.l.b16 %v1283
        %v1326 = vunpack.c.l.b16 %v1284
        %v1327 = vunpack.c.l.b16 %v1285
        %v1328 = vunpack.c.l.b16 %v1286
        %v1329 = vunpack.c.l.b16 %v1287
        %v1330 = vunpack.c.l.b16 %v1288
        %v1331 = vunpack.c.l.b16 %v1289
        %v1332 = vunpack.c.l.b16 %v1290
        %v1333 = vunpack.c.l.b16 %v1291
        %v1334 = vunpack.c.l.b16 %v1292
        %v1335 = vunpack.c.l.b16 %v1293
        %v1336 = vunpack.c.l.b16 %v1294
        %v1337 = vunpack.c.l.b16 %v1295
        %v1338 = vunpack.c.l.b16 %v1296
        %v1339 = vpack.c.b16 %v1324, %v1323
        %v1340 = vpack.c.b16 %v1326, %v1325
        %v1341 = vpack.c.b16 %v1328, %v1327
        %v1342 = vpack.c.b16 %v1330, %v1329
        %v1343 = vpack.c.b16 %v1332, %v1331
        %v1344 = vpack.c.b16 %v1334, %v1333
        %v1345 = vpack.c.b16 %v1336, %v1335
        %v1346 = vpack.c.b16 %v1338, %v1337
        %1355 = vmatprep.subr.bf16.mxu0 0
        %1356 = vmatpush1.bf16.msra.mxu0 %v1339
        %1357 = vmatprep.subr.bf16.mxu0 0
        %1358 = vmatpush1.bf16.msra.mxu0 %v1340
        %1359 = vmatprep.subr.bf16.mxu0 0
        %1360 = vmatpush1.bf16.msra.mxu0 %v1341
        %1361 = vmatprep.subr.bf16.mxu0 0
        %1362 = vmatpush1.bf16.msra.mxu0 %v1342
        %1363 = vmatprep.subr.bf16.mxu0 0
        %1364 = vmatpush1.bf16.msra.mxu0 %v1343
        %1365 = vmatprep.subr.bf16.mxu0 0
        %1366 = vmatpush1.bf16.msra.mxu0 %v1344
        %1367 = vmatprep.subr.bf16.mxu0 0
        %1368 = vmatpush1.bf16.msra.mxu0 %v1345
        %1369 = vmatprep.subr.bf16.mxu0 0
        %1370 = vmatpush1.bf16.msra.mxu0 %v1346
        %1371 = vmatprep.subr.bf16.mxu0 0
        %1372 = vmatpush1.bf16.msra.mxu0 0
        %1373 = vmatprep.subr.bf16.mxu0 0
        %1374 = vmatpush1.bf16.msra.mxu0 0
        %1375 = vmatprep.subr.bf16.mxu0 0
        %1376 = vmatpush1.bf16.msra.mxu0 0
        %1377 = vmatprep.subr.bf16.mxu0 0
        %1378 = vmatpush1.bf16.msra.mxu0 0
        %1379 = vmatprep.subr.bf16.mxu0 0
        %1380 = vmatpush1.bf16.msra.mxu0 0
        %1381 = vmatprep.subr.bf16.mxu0 0
        %1382 = vmatpush1.bf16.msra.mxu0 0
        %1383 = vmatprep.subr.bf16.mxu0 0
        %1384 = vmatpush1.bf16.msra.mxu0 0
        %1385 = vmatprep.subr.bf16.mxu0 0
        %1386 = vmatpush1.bf16.msra.mxu0 0
        %1387 = vmatprep.mubr.bf16.mxu0 0
        %1388 = vmatmul.mubr.bf16.gmra.mrb[0].mxu0 %v1299
        %v1389 = vpop.f32.mrb[0].mxu0
        %v1390 = vadd.f32 0.0, %v1389
        %v1391 = vpop.f32.mrb[0].mxu0
        %v1392 = vpop.f32.mrb[0].mxu0
        %v1393 = vadd.f32 0.0, %v1392
        %v1394 = vpop.f32.mrb[0].mxu0
        %1395 = vmatprep.mubr.bf16.mxu0 0
        %1396 = vmatmul.mubr.bf16.gmra.mrb[0].mxu0 %v1300
        %v1397 = vpop.f32.mrb[0].mxu0
        %v1398 = vadd.f32 0.0, %v1397
        %v1399 = vpop.f32.mrb[0].mxu0
        %v1400 = vpop.f32.mrb[0].mxu0
        %v1401 = vadd.f32 0.0, %v1400
        %v1402 = vpop.f32.mrb[0].mxu0
        %1403 = vmatprep.mubr.bf16.mxu0 0
        %1404 = vmatmul.mubr.bf16.gmra.mrb[0].mxu0 %v1301
        %v1405 = vpop.f32.mrb[0].mxu0
        %v1406 = vadd.f32 0.0, %v1405
        %v1407 = vpop.f32.mrb[0].mxu0
        %v1408 = vpop.f32.mrb[0].mxu0
        %v1409 = vadd.f32 0.0, %v1408
        %v1410 = vpop.f32.mrb[0].mxu0
        %1411 = vmatprep.mubr.bf16.mxu0 0
        %1412 = vmatmul.mubr.bf16.gmra.mrb[0].mxu0 %v1302
        %v1413 = vpop.f32.mrb[0].mxu0
        %v1414 = vadd.f32 0.0, %v1413
        %v1415 = vpop.f32.mrb[0].mxu0
        %v1416 = vpop.f32.mrb[0].mxu0
        %v1417 = vadd.f32 0.0, %v1416
        %v1418 = vpop.f32.mrb[0].mxu0
        %1419 = vdwg.mxu0
        %v1420 = vadd.f32 %v1272, %v1390
        %v1421 = vadd.f32 %v1273, %v1393
        %v1422 = vadd.f32 %v1274, %v1398
        %v1423 = vadd.f32 %v1275, %v1401
        %v1424 = vadd.f32 %v1276, %v1406
        %v1425 = vadd.f32 %v1277, %v1409
        %v1426 = vadd.f32 %v1278, %v1414
        %v1427 = vadd.f32 %v1279, %v1417
        %s1428 = scalar_lea.vmem %s3, 320
        %v1429 = vld [vmem:[%s1428] sm:$0xf]
        %v1430 = vld [vmem:[%s1428 + $0x4] sm:$0xf]
        %v1431 = vld [vmem:[%s1428 + $0x8] sm:$0xf]
        %v1432 = vld [vmem:[%s1428 + $0xc] sm:$0xf]
        %v1433 = vld [vmem:[%s1428 + $0x10] sm:$0xf]
        %v1434 = vld [vmem:[%s1428 + $0x14] sm:$0xf]
        %v1435 = vld [vmem:[%s1428 + $0x18] sm:$0xf]
        %v1436 = vld [vmem:[%s1428 + $0x1c] sm:$0xf]
        %v1437 = vld [vmem:[%s1428 + $0x20] sm:$0xf]
        %v1438 = vld [vmem:[%s1428 + $0x24] sm:$0xf]
        %v1439 = vld [vmem:[%s1428 + $0x28] sm:$0xf]
        %v1440 = vld [vmem:[%s1428 + $0x2c] sm:$0xf]
        %v1441 = vld [vmem:[%s1428 + $0x30] sm:$0xf]
        %v1442 = vld [vmem:[%s1428 + $0x34] sm:$0xf]
        %v1443 = vld [vmem:[%s1428 + $0x38] sm:$0xf]
        %v1444 = vld [vmem:[%s1428 + $0x3c] sm:$0xf]
        %v1446 = vunpack.c.l.b16 %v661
        %v1447 = vpack.c.b16 %v997, %v996
        %v1448 = vpack.c.b16 %v999, %v998
        %v1449 = vpack.c.b16 %v1001, %v1000
        %v1450 = vpack.c.b16 %v1446, %v1002
        %v1471 = vunpack.c.l.b16 %v1429
        %v1472 = vunpack.c.l.b16 %v1430
        %v1473 = vunpack.c.l.b16 %v1431
        %v1474 = vunpack.c.l.b16 %v1432
        %v1475 = vunpack.c.l.b16 %v1433
        %v1476 = vunpack.c.l.b16 %v1434
        %v1477 = vunpack.c.l.b16 %v1435
        %v1478 = vunpack.c.l.b16 %v1436
        %v1479 = vunpack.c.l.b16 %v1437
        %v1480 = vunpack.c.l.b16 %v1438
        %v1481 = vunpack.c.l.b16 %v1439
        %v1482 = vunpack.c.l.b16 %v1440
        %v1483 = vunpack.c.l.b16 %v1441
        %v1484 = vunpack.c.l.b16 %v1442
        %v1485 = vunpack.c.l.b16 %v1443
        %v1486 = vunpack.c.l.b16 %v1444
        %v1487 = vpack.c.b16 %v1472, %v1471
        %v1488 = vpack.c.b16 %v1474, %v1473
        %v1489 = vpack.c.b16 %v1476, %v1475
        %v1490 = vpack.c.b16 %v1478, %v1477
        %v1491 = vpack.c.b16 %v1480, %v1479
        %v1492 = vpack.c.b16 %v1482, %v1481
        %v1493 = vpack.c.b16 %v1484, %v1483
        %v1494 = vpack.c.b16 %v1486, %v1485
        %1503 = vmatprep.subr.bf16.mxu0 0
        %1504 = vmatpush1.bf16.msra.mxu0 %v1487
        %1505 = vmatprep.subr.bf16.mxu0 0
        %1506 = vmatpush1.bf16.msra.mxu0 %v1488
        %1507 = vmatprep.subr.bf16.mxu0 0
        %1508 = vmatpush1.bf16.msra.mxu0 %v1489
        %1509 = vmatprep.subr.bf16.mxu0 0
        %1510 = vmatpush1.bf16.msra.mxu0 %v1490
        %1511 = vmatprep.subr.bf16.mxu0 0
        %1512 = vmatpush1.bf16.msra.mxu0 %v1491
        %1513 = vmatprep.subr.bf16.mxu0 0
        %1514 = vmatpush1.bf16.msra.mxu0 %v1492
        %1515 = vmatprep.subr.bf16.mxu0 0
        %1516 = vmatpush1.bf16.msra.mxu0 %v1493
        %1517 = vmatprep.subr.bf16.mxu0 0
        %1518 = vmatpush1.bf16.msra.mxu0 %v1494
        %1519 = vmatprep.subr.bf16.mxu0 0
        %1520 = vmatpush1.bf16.msra.mxu0 0
        %1521 = vmatprep.subr.bf16.mxu0 0
        %1522 = vmatpush1.bf16.msra.mxu0 0
        %1523 = vmatprep.subr.bf16.mxu0 0
        %1524 = vmatpush1.bf16.msra.mxu0 0
        %1525 = vmatprep.subr.bf16.mxu0 0
        %1526 = vmatpush1.bf16.msra.mxu0 0
        %1527 = vmatprep.subr.bf16.mxu0 0
        %1528 = vmatpush1.bf16.msra.mxu0 0
        %1529 = vmatprep.subr.bf16.mxu0 0
        %1530 = vmatpush1.bf16.msra.mxu0 0
        %1531 = vmatprep.subr.bf16.mxu0 0
        %1532 = vmatpush1.bf16.msra.mxu0 0
        %1533 = vmatprep.subr.bf16.mxu0 0
        %1534 = vmatpush1.bf16.msra.mxu0 0
        %1535 = vmatprep.mubr.bf16.mxu0 0
        %1536 = vmatmul.mubr.bf16.gmra.mrb[0].mxu0 %v1447
        %v1537 = vpop.f32.mrb[0].mxu0
        %v1538 = vadd.f32 0.0, %v1537
        %v1539 = vpop.f32.mrb[0].mxu0
        %v1540 = vpop.f32.mrb[0].mxu0
        %v1541 = vadd.f32 0.0, %v1540
        %v1542 = vpop.f32.mrb[0].mxu0
        %1543 = vmatprep.mubr.bf16.mxu0 0
        %1544 = vmatmul.mubr.bf16.gmra.mrb[0].mxu0 %v1448
        %v1545 = vpop.f32.mrb[0].mxu0
        %v1546 = vadd.f32 0.0, %v1545
        %v1547 = vpop.f32.mrb[0].mxu0
        %v1548 = vpop.f32.mrb[0].mxu0
        %v1549 = vadd.f32 0.0, %v1548
        %v1550 = vpop.f32.mrb[0].mxu0
        %1551 = vmatprep.mubr.bf16.mxu0 0
        %1552 = vmatmul.mubr.bf16.gmra.mrb[0].mxu0 %v1449
        %v1553 = vpop.f32.mrb[0].mxu0
        %v1554 = vadd.f32 0.0, %v1553
        %v1555 = vpop.f32.mrb[0].mxu0
        %v1556 = vpop.f32.mrb[0].mxu0
        %v1557 = vadd.f32 0.0, %v1556
        %v1558 = vpop.f32.mrb[0].mxu0
        %1559 = vmatprep.mubr.bf16.mxu0 0
        %1560 = vmatmul.mubr.bf16.gmra.mrb[0].mxu0 %v1450
        %v1561 = vpop.f32.mrb[0].mxu0
        %v1562 = vadd.f32 0.0, %v1561
        %v1563 = vpop.f32.mrb[0].mxu0
        %v1564 = vpop.f32.mrb[0].mxu0
        %v1565 = vadd.f32 0.0, %v1564
        %v1566 = vpop.f32.mrb[0].mxu0
        %1567 = vdwg.mxu0
        %v1568 = vadd.f32 %v1420, %v1538
        %v1569 = vadd.f32 %v1421, %v1541
        %v1570 = vadd.f32 %v1422, %v1546
        %v1571 = vadd.f32 %v1423, %v1549
        %v1572 = vadd.f32 %v1424, %v1554
        %v1573 = vadd.f32 %v1425, %v1557
        %v1574 = vadd.f32 %v1426, %v1562
        %v1575 = vadd.f32 %v1427, %v1565
        %s1576 = scalar_lea.vmem %s3, 384
        %v1577 = vld [vmem:[%s1576] sm:$0xf]
        %v1578 = vld [vmem:[%s1576 + $0x4] sm:$0xf]
        %v1579 = vld [vmem:[%s1576 + $0x8] sm:$0xf]
        %v1580 = vld [vmem:[%s1576 + $0xc] sm:$0xf]
        %v1581 = vld [vmem:[%s1576 + $0x10] sm:$0xf]
        %v1582 = vld [vmem:[%s1576 + $0x14] sm:$0xf]
        %v1583 = vld [vmem:[%s1576 + $0x18] sm:$0xf]
        %v1584 = vld [vmem:[%s1576 + $0x1c] sm:$0xf]
        %v1585 = vld [vmem:[%s1576 + $0x20] sm:$0xf]
        %v1586 = vld [vmem:[%s1576 + $0x24] sm:$0xf]
        %v1587 = vld [vmem:[%s1576 + $0x28] sm:$0xf]
        %v1588 = vld [vmem:[%s1576 + $0x2c] sm:$0xf]
        %v1589 = vld [vmem:[%s1576 + $0x30] sm:$0xf]
        %v1590 = vld [vmem:[%s1576 + $0x34] sm:$0xf]
        %v1591 = vld [vmem:[%s1576 + $0x38] sm:$0xf]
        %v1592 = vld [vmem:[%s1576 + $0x3c] sm:$0xf]
        %v1594 = vunpack.c.l.b16 %v622
        %v1595 = vpack.c.b16 %v1594, %v1150
        %v1613 = vunpack.c.l.b16 %v1577
        %v1614 = vunpack.c.l.b16 %v1578
        %v1615 = vunpack.c.l.b16 %v1579
        %v1616 = vunpack.c.l.b16 %v1580
        %v1617 = vunpack.c.l.b16 %v1581
        %v1618 = vunpack.c.l.b16 %v1582
        %v1619 = vunpack.c.l.b16 %v1583
        %v1620 = vunpack.c.l.b16 %v1584
        %v1621 = vunpack.c.l.b16 %v1585
        %v1622 = vunpack.c.l.b16 %v1586
        %v1623 = vunpack.c.l.b16 %v1587
        %v1624 = vunpack.c.l.b16 %v1588
        %v1625 = vunpack.c.l.b16 %v1589
        %v1626 = vunpack.c.l.b16 %v1590
        %v1627 = vunpack.c.l.b16 %v1591
        %v1628 = vunpack.c.l.b16 %v1592
        %v1629 = vpack.c.b16 %v1614, %v1613
        %v1630 = vpack.c.b16 %v1616, %v1615
        %v1631 = vpack.c.b16 %v1618, %v1617
        %v1632 = vpack.c.b16 %v1620, %v1619
        %v1633 = vpack.c.b16 %v1622, %v1621
        %v1634 = vpack.c.b16 %v1624, %v1623
        %v1635 = vpack.c.b16 %v1626, %v1625
        %v1636 = vpack.c.b16 %v1628, %v1627
        %1645 = vmatprep.subr.bf16.mxu0 0
        %1646 = vmatpush1.bf16.msra.mxu0 %v1629
        %1647 = vmatprep.subr.bf16.mxu0 0
        %1648 = vmatpush1.bf16.msra.mxu0 %v1630
        %1649 = vmatprep.subr.bf16.mxu0 0
        %1650 = vmatpush1.bf16.msra.mxu0 %v1631
        %1651 = vmatprep.subr.bf16.mxu0 0
        %1652 = vmatpush1.bf16.msra.mxu0 %v1632
        %1653 = vmatprep.subr.bf16.mxu0 0
        %1654 = vmatpush1.bf16.msra.mxu0 %v1633
        %1655 = vmatprep.subr.bf16.mxu0 0
        %1656 = vmatpush1.bf16.msra.mxu0 %v1634
        %1657 = vmatprep.subr.bf16.mxu0 0
        %1658 = vmatpush1.bf16.msra.mxu0 %v1635
        %1659 = vmatprep.subr.bf16.mxu0 0
        %1660 = vmatpush1.bf16.msra.mxu0 %v1636
        %1661 = vmatprep.subr.bf16.mxu0 0
        %1662 = vmatpush1.bf16.msra.mxu0 0
        %1663 = vmatprep.subr.bf16.mxu0 0
        %1664 = vmatpush1.bf16.msra.mxu0 0
        %1665 = vmatprep.subr.bf16.mxu0 0
        %1666 = vmatpush1.bf16.msra.mxu0 0
        %1667 = vmatprep.subr.bf16.mxu0 0
        %1668 = vmatpush1.bf16.msra.mxu0 0
        %1669 = vmatprep.subr.bf16.mxu0 0
        %1670 = vmatpush1.bf16.msra.mxu0 0
        %1671 = vmatprep.subr.bf16.mxu0 0
        %1672 = vmatpush1.bf16.msra.mxu0 0
        %1673 = vmatprep.subr.bf16.mxu0 0
        %1674 = vmatpush1.bf16.msra.mxu0 0
        %1675 = vmatprep.subr.bf16.mxu0 0
        %1676 = vmatpush1.bf16.msra.mxu0 0
        %1677 = vmatprep.mubr.bf16.mxu0 0
        %1678 = vmatmul.mubr.bf16.gmra.mrb[0].mxu0 %v850
        %v1679 = vpop.f32.mrb[0].mxu0
        %v1680 = vadd.f32 0.0, %v1679
        %v1681 = vpop.f32.mrb[0].mxu0
        %v1682 = vpop.f32.mrb[0].mxu0
        %v1683 = vadd.f32 0.0, %v1682
        %v1684 = vpop.f32.mrb[0].mxu0
        %1685 = vmatprep.mubr.bf16.mxu0 0
        %1686 = vmatmul.mubr.bf16.gmra.mrb[0].mxu0 %v851
        %v1687 = vpop.f32.mrb[0].mxu0
        %v1688 = vadd.f32 0.0, %v1687
        %v1689 = vpop.f32.mrb[0].mxu0
        %v1690 = vpop.f32.mrb[0].mxu0
        %v1691 = vadd.f32 0.0, %v1690
        %v1692 = vpop.f32.mrb[0].mxu0
        %1693 = vmatprep.mubr.bf16.mxu0 0
        %1694 = vmatmul.mubr.bf16.gmra.mrb[0].mxu0 %v852
        %v1695 = vpop.f32.mrb[0].mxu0
        %v1696 = vadd.f32 0.0, %v1695
        %v1697 = vpop.f32.mrb[0].mxu0
        %v1698 = vpop.f32.mrb[0].mxu0
        %v1699 = vadd.f32 0.0, %v1698
        %v1700 = vpop.f32.mrb[0].mxu0
        %1701 = vmatprep.mubr.bf16.mxu0 0
        %1702 = vmatmul.mubr.bf16.gmra.mrb[0].mxu0 %v1595
        %v1703 = vpop.f32.mrb[0].mxu0
        %v1704 = vadd.f32 0.0, %v1703
        %v1705 = vpop.f32.mrb[0].mxu0
        %v1706 = vpop.f32.mrb[0].mxu0
        %v1707 = vadd.f32 0.0, %v1706
        %v1708 = vpop.f32.mrb[0].mxu0
        %1709 = vdwg.mxu0
        %v1710 = vadd.f32 %v1568, %v1680
        %v1711 = vadd.f32 %v1569, %v1683
        %v1712 = vadd.f32 %v1570, %v1688
        %v1713 = vadd.f32 %v1571, %v1691
        %v1714 = vadd.f32 %v1572, %v1696
        %v1715 = vadd.f32 %v1573, %v1699
        %v1716 = vadd.f32 %v1574, %v1704
        %v1717 = vadd.f32 %v1575, %v1707
        %s1718 = scalar_lea.vmem %s3, 448
        %v1719 = vld [vmem:[%s1718] sm:$0xf]
        %v1720 = vld [vmem:[%s1718 + $0x4] sm:$0xf]
        %v1721 = vld [vmem:[%s1718 + $0x8] sm:$0xf]
        %v1722 = vld [vmem:[%s1718 + $0xc] sm:$0xf]
        %v1723 = vld [vmem:[%s1718 + $0x10] sm:$0xf]
        %v1724 = vld [vmem:[%s1718 + $0x14] sm:$0xf]
        %v1725 = vld [vmem:[%s1718 + $0x18] sm:$0xf]
        %v1726 = vld [vmem:[%s1718 + $0x1c] sm:$0xf]
        %v1727 = vld [vmem:[%s1718 + $0x20] sm:$0xf]
        %v1728 = vld [vmem:[%s1718 + $0x24] sm:$0xf]
        %v1729 = vld [vmem:[%s1718 + $0x28] sm:$0xf]
        %v1730 = vld [vmem:[%s1718 + $0x2c] sm:$0xf]
        %v1731 = vld [vmem:[%s1718 + $0x30] sm:$0xf]
        %v1732 = vld [vmem:[%s1718 + $0x34] sm:$0xf]
        %v1733 = vld [vmem:[%s1718 + $0x38] sm:$0xf]
        %v1734 = vld [vmem:[%s1718 + $0x3c] sm:$0xf]
        %v1736 = vunpack.c.l.b16 %v642
        %v1737 = vpack.c.b16 %v1736, %v1298
        %v1755 = vunpack.c.l.b16 %v1719
        %v1756 = vunpack.c.l.b16 %v1720
        %v1757 = vunpack.c.l.b16 %v1721
        %v1758 = vunpack.c.l.b16 %v1722
        %v1759 = vunpack.c.l.b16 %v1723
        %v1760 = vunpack.c.l.b16 %v1724
        %v1761 = vunpack.c.l.b16 %v1725
        %v1762 = vunpack.c.l.b16 %v1726
        %v1763 = vunpack.c.l.b16 %v1727
        %v1764 = vunpack.c.l.b16 %v1728
        %v1765 = vunpack.c.l.b16 %v1729
        %v1766 = vunpack.c.l.b16 %v1730
        %v1767 = vunpack.c.l.b16 %v1731
        %v1768 = vunpack.c.l.b16 %v1732
        %v1769 = vunpack.c.l.b16 %v1733
        %v1770 = vunpack.c.l.b16 %v1734
        %v1771 = vpack.c.b16 %v1756, %v1755
        %v1772 = vpack.c.b16 %v1758, %v1757
        %v1773 = vpack.c.b16 %v1760, %v1759
        %v1774 = vpack.c.b16 %v1762, %v1761
        %v1775 = vpack.c.b16 %v1764, %v1763
        %v1776 = vpack.c.b16 %v1766, %v1765
        %v1777 = vpack.c.b16 %v1768, %v1767
        %v1778 = vpack.c.b16 %v1770, %v1769
        %1787 = vmatprep.subr.bf16.mxu0 0
        %1788 = vmatpush1.bf16.msra.mxu0 %v1771
        %1789 = vmatprep.subr.bf16.mxu0 0
        %1790 = vmatpush1.bf16.msra.mxu0 %v1772
        %1791 = vmatprep.subr.bf16.mxu0 0
        %1792 = vmatpush1.bf16.msra.mxu0 %v1773
        %1793 = vmatprep.subr.bf16.mxu0 0
        %1794 = vmatpush1.bf16.msra.mxu0 %v1774
        %1795 = vmatprep.subr.bf16.mxu0 0
        %1796 = vmatpush1.bf16.msra.mxu0 %v1775
        %1797 = vmatprep.subr.bf16.mxu0 0
        %1798 = vmatpush1.bf16.msra.mxu0 %v1776
        %1799 = vmatprep.subr.bf16.mxu0 0
        %1800 = vmatpush1.bf16.msra.mxu0 %v1777
        %1801 = vmatprep.subr.bf16.mxu0 0
        %1802 = vmatpush1.bf16.msra.mxu0 %v1778
        %1803 = vmatprep.subr.bf16.mxu0 0
        %1804 = vmatpush1.bf16.msra.mxu0 0
        %1805 = vmatprep.subr.bf16.mxu0 0
        %1806 = vmatpush1.bf16.msra.mxu0 0
        %1807 = vmatprep.subr.bf16.mxu0 0
        %1808 = vmatpush1.bf16.msra.mxu0 0
        %1809 = vmatprep.subr.bf16.mxu0 0
        %1810 = vmatpush1.bf16.msra.mxu0 0
        %1811 = vmatprep.subr.bf16.mxu0 0
        %1812 = vmatpush1.bf16.msra.mxu0 0
        %1813 = vmatprep.subr.bf16.mxu0 0
        %1814 = vmatpush1.bf16.msra.mxu0 0
        %1815 = vmatprep.subr.bf16.mxu0 0
        %1816 = vmatpush1.bf16.msra.mxu0 0
        %1817 = vmatprep.subr.bf16.mxu0 0
        %1818 = vmatpush1.bf16.msra.mxu0 0
        %1819 = vmatprep.mubr.bf16.mxu0 0
        %1820 = vmatmul.mubr.bf16.gmra.mrb[0].mxu0 %v713
        %v1821 = vpop.f32.mrb[0].mxu0
        %v1822 = vadd.f32 0.0, %v1821
        %v1823 = vpop.f32.mrb[0].mxu0
        %v1824 = vpop.f32.mrb[0].mxu0
        %v1825 = vadd.f32 0.0, %v1824
        %v1826 = vpop.f32.mrb[0].mxu0
        %1827 = vmatprep.mubr.bf16.mxu0 0
        %1828 = vmatmul.mubr.bf16.gmra.mrb[0].mxu0 %v714
        %v1829 = vpop.f32.mrb[0].mxu0
        %v1830 = vadd.f32 0.0, %v1829
        %v1831 = vpop.f32.mrb[0].mxu0
        %v1832 = vpop.f32.mrb[0].mxu0
        %v1833 = vadd.f32 0.0, %v1832
        %v1834 = vpop.f32.mrb[0].mxu0
        %1835 = vmatprep.mubr.bf16.mxu0 0
        %1836 = vmatmul.mubr.bf16.gmra.mrb[0].mxu0 %v715
        %v1837 = vpop.f32.mrb[0].mxu0
        %v1838 = vadd.f32 0.0, %v1837
        %v1839 = vpop.f32.mrb[0].mxu0
        %v1840 = vpop.f32.mrb[0].mxu0
        %v1841 = vadd.f32 0.0, %v1840
        %v1842 = vpop.f32.mrb[0].mxu0
        %1843 = vmatprep.mubr.bf16.mxu0 0
        %1844 = vmatmul.mubr.bf16.gmra.mrb[0].mxu0 %v1737
        %v1845 = vpop.f32.mrb[0].mxu0
        %v1846 = vadd.f32 0.0, %v1845
        %v1847 = vpop.f32.mrb[0].mxu0
        %v1848 = vpop.f32.mrb[0].mxu0
        %v1849 = vadd.f32 0.0, %v1848
        %v1850 = vpop.f32.mrb[0].mxu0
        %1851 = vdwg.mxu0
        %v1852 = vadd.f32 %v1710, %v1822
        %v1853 = vadd.f32 %v1711, %v1825
        %v1854 = vadd.f32 %v1712, %v1830
        %v1855 = vadd.f32 %v1713, %v1833
        %v1856 = vadd.f32 %v1714, %v1838
        %v1857 = vadd.f32 %v1715, %v1841
        %v1858 = vadd.f32 %v1716, %v1846
        %v1859 = vadd.f32 %v1717, %v1849
        %s1860 = scalar_lea.vmem %s3, 512
        %v1861 = vld [vmem:[%s1860] sm:$0xf]
        %v1862 = vld [vmem:[%s1860 + $0x4] sm:$0xf]
        %v1863 = vld [vmem:[%s1860 + $0x8] sm:$0xf]
        %v1864 = vld [vmem:[%s1860 + $0xc] sm:$0xf]
        %v1865 = vld [vmem:[%s1860 + $0x10] sm:$0xf]
        %v1866 = vld [vmem:[%s1860 + $0x14] sm:$0xf]
        %v1867 = vld [vmem:[%s1860 + $0x18] sm:$0xf]
        %v1868 = vld [vmem:[%s1860 + $0x1c] sm:$0xf]
        %v1869 = vld [vmem:[%s1860 + $0x20] sm:$0xf]
        %v1870 = vld [vmem:[%s1860 + $0x24] sm:$0xf]
        %v1871 = vld [vmem:[%s1860 + $0x28] sm:$0xf]
        %v1872 = vld [vmem:[%s1860 + $0x2c] sm:$0xf]
        %v1873 = vld [vmem:[%s1860 + $0x30] sm:$0xf]
        %v1874 = vld [vmem:[%s1860 + $0x34] sm:$0xf]
        %v1875 = vld [vmem:[%s1860 + $0x38] sm:$0xf]
        %v1876 = vld [vmem:[%s1860 + $0x3c] sm:$0xf]
        %v1878 = vunpack.c.l.b16 %v662
        %v1879 = vpack.c.b16 %v1878, %v1446
        %v1897 = vunpack.c.l.b16 %v1861
        %v1898 = vunpack.c.l.b16 %v1862
        %v1899 = vunpack.c.l.b16 %v1863
        %v1900 = vunpack.c.l.b16 %v1864
        %v1901 = vunpack.c.l.b16 %v1865
        %v1902 = vunpack.c.l.b16 %v1866
        %v1903 = vunpack.c.l.b16 %v1867
        %v1904 = vunpack.c.l.b16 %v1868
        %v1905 = vunpack.c.l.b16 %v1869
        %v1906 = vunpack.c.l.b16 %v1870
        %v1907 = vunpack.c.l.b16 %v1871
        %v1908 = vunpack.c.l.b16 %v1872
        %v1909 = vunpack.c.l.b16 %v1873
        %v1910 = vunpack.c.l.b16 %v1874
        %v1911 = vunpack.c.l.b16 %v1875
        %v1912 = vunpack.c.l.b16 %v1876
        %v1913 = vpack.c.b16 %v1898, %v1897
        %v1914 = vpack.c.b16 %v1900, %v1899
        %v1915 = vpack.c.b16 %v1902, %v1901
        %v1916 = vpack.c.b16 %v1904, %v1903
        %v1917 = vpack.c.b16 %v1906, %v1905
        %v1918 = vpack.c.b16 %v1908, %v1907
        %v1919 = vpack.c.b16 %v1910, %v1909
        %v1920 = vpack.c.b16 %v1912, %v1911
        %1929 = vmatprep.subr.bf16.mxu0 0
        %1930 = vmatpush1.bf16.msra.mxu0 %v1913
        %1931 = vmatprep.subr.bf16.mxu0 0
        %1932 = vmatpush1.bf16.msra.mxu0 %v1914
        %1933 = vmatprep.subr.bf16.mxu0 0
        %1934 = vmatpush1.bf16.msra.mxu0 %v1915
        %1935 = vmatprep.subr.bf16.mxu0 0
        %1936 = vmatpush1.bf16.msra.mxu0 %v1916
        %1937 = vmatprep.subr.bf16.mxu0 0
        %1938 = vmatpush1.bf16.msra.mxu0 %v1917
        %1939 = vmatprep.subr.bf16.mxu0 0
        %1940 = vmatpush1.bf16.msra.mxu0 %v1918
        %1941 = vmatprep.subr.bf16.mxu0 0
        %1942 = vmatpush1.bf16.msra.mxu0 %v1919
        %1943 = vmatprep.subr.bf16.mxu0 0
        %1944 = vmatpush1.bf16.msra.mxu0 %v1920
        %1945 = vmatprep.subr.bf16.mxu0 0
        %1946 = vmatpush1.bf16.msra.mxu0 0
        %1947 = vmatprep.subr.bf16.mxu0 0
        %1948 = vmatpush1.bf16.msra.mxu0 0
        %1949 = vmatprep.subr.bf16.mxu0 0
        %1950 = vmatpush1.bf16.msra.mxu0 0
        %1951 = vmatprep.subr.bf16.mxu0 0
        %1952 = vmatpush1.bf16.msra.mxu0 0
        %1953 = vmatprep.subr.bf16.mxu0 0
        %1954 = vmatpush1.bf16.msra.mxu0 0
        %1955 = vmatprep.subr.bf16.mxu0 0
        %1956 = vmatpush1.bf16.msra.mxu0 0
        %1957 = vmatprep.subr.bf16.mxu0 0
        %1958 = vmatpush1.bf16.msra.mxu0 0
        %1959 = vmatprep.subr.bf16.mxu0 0
        %1960 = vmatpush1.bf16.msra.mxu0 0
        %1961 = vmatprep.mubr.bf16.mxu0 0
        %1962 = vmatmul.mubr.bf16.gmra.mrb[0].mxu0 %v1004
        %v1963 = vpop.f32.mrb[0].mxu0
        %v1964 = vadd.f32 0.0, %v1963
        %v1965 = vpop.f32.mrb[0].mxu0
        %v1966 = vpop.f32.mrb[0].mxu0
        %v1967 = vadd.f32 0.0, %v1966
        %v1968 = vpop.f32.mrb[0].mxu0
        %1969 = vmatprep.mubr.bf16.mxu0 0
        %1970 = vmatmul.mubr.bf16.gmra.mrb[0].mxu0 %v1005
        %v1971 = vpop.f32.mrb[0].mxu0
        %v1972 = vadd.f32 0.0, %v1971
        %v1973 = vpop.f32.mrb[0].mxu0
        %v1974 = vpop.f32.mrb[0].mxu0
        %v1975 = vadd.f32 0.0, %v1974
        %v1976 = vpop.f32.mrb[0].mxu0
        %1977 = vmatprep.mubr.bf16.mxu0 0
        %1978 = vmatmul.mubr.bf16.gmra.mrb[0].mxu0 %v1006
        %v1979 = vpop.f32.mrb[0].mxu0
        %v1980 = vadd.f32 0.0, %v1979
        %v1981 = vpop.f32.mrb[0].mxu0
        %v1982 = vpop.f32.mrb[0].mxu0
        %v1983 = vadd.f32 0.0, %v1982
        %v1984 = vpop.f32.mrb[0].mxu0
        %1985 = vmatprep.mubr.bf16.mxu0 0
        %1986 = vmatmul.mubr.bf16.gmra.mrb[0].mxu0 %v1879
        %v1987 = vpop.f32.mrb[0].mxu0
        %v1988 = vadd.f32 0.0, %v1987
        %v1989 = vpop.f32.mrb[0].mxu0
        %v1990 = vpop.f32.mrb[0].mxu0
        %v1991 = vadd.f32 0.0, %v1990
        %v1992 = vpop.f32.mrb[0].mxu0
        %1993 = vdwg.mxu0
        %v1994 = vadd.f32 %v1852, %v1964
        %v1995 = vadd.f32 %v1853, %v1967
        %v1996 = vadd.f32 %v1854, %v1972
        %v1997 = vadd.f32 %v1855, %v1975
        %v1998 = vadd.f32 %v1856, %v1980
        %v1999 = vadd.f32 %v1857, %v1983
        %v2000 = vadd.f32 %v1858, %v1988
        %v2001 = vadd.f32 %v1859, %v1991
        %v2002 = vld [vmem:[%s4] sm:$0x1]
        %v2004 = vlaneseq
        %v2005 = vshrl.u32 %v2004, 7
        %v2006 = vsub.s32 0, %v2005
        %v2007 = vrot.slane %v2002, %v2006
        %v2009 = vadd.f32 %v1994, %v2007
        %v2010 = vadd.f32 %v1995, %v2007
        %v2011 = vadd.f32 %v1996, %v2007
        %v2012 = vadd.f32 %v1997, %v2007
        %v2013 = vadd.f32 %v1998, %v2007
        %v2014 = vadd.f32 %v1999, %v2007
        %v2015 = vadd.f32 %v2000, %v2007
        %v2016 = vadd.f32 %v2001, %v2007
        %v2017 = vmax.f32 %v2009, 0.0
        %v2018 = vmax.f32 %v2010, 0.0
        %v2019 = vmax.f32 %v2011, 0.0
        %v2020 = vmax.f32 %v2012, 0.0
        %v2021 = vmax.f32 %v2013, 0.0
        %v2022 = vmax.f32 %v2014, 0.0
        %v2023 = vmax.f32 %v2015, 0.0
        %v2024 = vmax.f32 %v2016, 0.0
        %v2025 = vpack.c.bf16 %v2018, %v2017
        %v2026 = vpack.c.bf16 %v2020, %v2019
        %v2027 = vpack.c.bf16 %v2022, %v2021
        %v2028 = vpack.c.bf16 %v2024, %v2023
        %v2029 = vld [vmem:[%s5] sm:$0xf]
        %v2030 = vld [vmem:[%s5 + $0x4] sm:$0xf]
        %v2031 = vld [vmem:[%s5 + $0x8] sm:$0xf]
        %v2032 = vld [vmem:[%s5 + $0xc] sm:$0xf]
        %v2033 = vld [vmem:[%s5 + $0x10] sm:$0xf]
        %v2034 = vld [vmem:[%s5 + $0x14] sm:$0xf]
        %v2035 = vld [vmem:[%s5 + $0x18] sm:$0xf]
        %v2036 = vld [vmem:[%s5 + $0x1c] sm:$0xf]
        %v2037 = vld [vmem:[%s5 + $0x20] sm:$0xf]
        %v2038 = vld [vmem:[%s5 + $0x24] sm:$0xf]
        %v2039 = vld [vmem:[%s5 + $0x28] sm:$0xf]
        %v2040 = vld [vmem:[%s5 + $0x2c] sm:$0xf]
        %v2041 = vld [vmem:[%s5 + $0x30] sm:$0xf]
        %v2042 = vld [vmem:[%s5 + $0x34] sm:$0xf]
        %v2043 = vld [vmem:[%s5 + $0x38] sm:$0xf]
        %v2044 = vld [vmem:[%s5 + $0x3c] sm:$0xf]
        %v2045 = vld [vmem:[%s6] sm:$0x1]
        %v2047 = vlaneseq
        %v2048 = vshrl.u32 %v2047, 7
        %v2049 = vsub.s32 0, %v2048
        %v2050 = vrot.slane %v2045, %v2049
        %v2068 = vunpack.c.l.b16 %v2029
        %v2069 = vunpack.c.l.b16 %v2030
        %v2070 = vunpack.c.l.b16 %v2031
        %v2071 = vunpack.c.l.b16 %v2032
        %v2072 = vunpack.c.l.b16 %v2033
        %v2073 = vunpack.c.l.b16 %v2034
        %v2074 = vunpack.c.l.b16 %v2035
        %v2075 = vunpack.c.l.b16 %v2036
        %v2076 = vunpack.c.l.b16 %v2037
        %v2077 = vunpack.c.l.b16 %v2038
        %v2078 = vunpack.c.l.b16 %v2039
        %v2079 = vunpack.c.l.b16 %v2040
        %v2080 = vunpack.c.l.b16 %v2041
        %v2081 = vunpack.c.l.b16 %v2042
        %v2082 = vunpack.c.l.b16 %v2043
        %v2083 = vunpack.c.l.b16 %v2044
        %v2084 = vpack.c.b16 %v2069, %v2068
        %v2085 = vpack.c.b16 %v2071, %v2070
        %v2086 = vpack.c.b16 %v2073, %v2072
        %v2087 = vpack.c.b16 %v2075, %v2074
        %v2088 = vpack.c.b16 %v2077, %v2076
        %v2089 = vpack.c.b16 %v2079, %v2078
        %v2090 = vpack.c.b16 %v2081, %v2080
        %v2091 = vpack.c.b16 %v2083, %v2082
        %2100 = vmatprep.subr.bf16.mxu0 0
        %2101 = vmatpush1.bf16.msra.mxu0 %v2084
        %2102 = vmatprep.subr.bf16.mxu0 0
        %2103 = vmatpush1.bf16.msra.mxu0 %v2085
        %2104 = vmatprep.subr.bf16.mxu0 0
        %2105 = vmatpush1.bf16.msra.mxu0 %v2086
        %2106 = vmatprep.subr.bf16.mxu0 0
        %2107 = vmatpush1.bf16.msra.mxu0 %v2087
        %2108 = vmatprep.subr.bf16.mxu0 0
        %2109 = vmatpush1.bf16.msra.mxu0 %v2088
        %2110 = vmatprep.subr.bf16.mxu0 0
        %2111 = vmatpush1.bf16.msra.mxu0 %v2089
        %2112 = vmatprep.subr.bf16.mxu0 0
        %2113 = vmatpush1.bf16.msra.mxu0 %v2090
        %2114 = vmatprep.subr.bf16.mxu0 0
        %2115 = vmatpush1.bf16.msra.mxu0 %v2091
        %2116 = vmatprep.subr.bf16.mxu0 0
        %2117 = vmatpush1.bf16.msra.mxu0 0
        %2118 = vmatprep.subr.bf16.mxu0 0
        %2119 = vmatpush1.bf16.msra.mxu0 0
        %2120 = vmatprep.subr.bf16.mxu0 0
        %2121 = vmatpush1.bf16.msra.mxu0 0
        %2122 = vmatprep.subr.bf16.mxu0 0
        %2123 = vmatpush1.bf16.msra.mxu0 0
        %2124 = vmatprep.subr.bf16.mxu0 0
        %2125 = vmatpush1.bf16.msra.mxu0 0
        %2126 = vmatprep.subr.bf16.mxu0 0
        %2127 = vmatpush1.bf16.msra.mxu0 0
        %2128 = vmatprep.subr.bf16.mxu0 0
        %2129 = vmatpush1.bf16.msra.mxu0 0
        %2130 = vmatprep.subr.bf16.mxu0 0
        %2131 = vmatpush1.bf16.msra.mxu0 0
        %2132 = vmatprep.mubr.bf16.mxu0 0
        %2133 = vmatmul.mubr.bf16.gmra.mrb[0].mxu0 %v2025
        %v2134 = vpop.f32.mrb[0].mxu0
        %v2135 = vadd.f32 %v2050, %v2134
        %v2136 = vpop.f32.mrb[0].mxu0
        %v2137 = vpop.f32.mrb[0].mxu0
        %v2138 = vadd.f32 %v2050, %v2137
        %v2139 = vpop.f32.mrb[0].mxu0
        %2140 = vmatprep.mubr.bf16.mxu0 0
        %2141 = vmatmul.mubr.bf16.gmra.mrb[0].mxu0 %v2026
        %v2142 = vpop.f32.mrb[0].mxu0
        %v2143 = vadd.f32 %v2050, %v2142
        %v2144 = vpop.f32.mrb[0].mxu0
        %v2145 = vpop.f32.mrb[0].mxu0
        %v2146 = vadd.f32 %v2050, %v2145
        %v2147 = vpop.f32.mrb[0].mxu0
        %2148 = vmatprep.mubr.bf16.mxu0 0
        %2149 = vmatmul.mubr.bf16.gmra.mrb[0].mxu0 %v2027
        %v2150 = vpop.f32.mrb[0].mxu0
        %v2151 = vadd.f32 %v2050, %v2150
        %v2152 = vpop.f32.mrb[0].mxu0
        %v2153 = vpop.f32.mrb[0].mxu0
        %v2154 = vadd.f32 %v2050, %v2153
        %v2155 = vpop.f32.mrb[0].mxu0
        %2156 = vmatprep.mubr.bf16.mxu0 0
        %2157 = vmatmul.mubr.bf16.gmra.mrb[0].mxu0 %v2028
        %v2158 = vpop.f32.mrb[0].mxu0
        %v2159 = vadd.f32 %v2050, %v2158
        %v2160 = vpop.f32.mrb[0].mxu0
        %v2161 = vpop.f32.mrb[0].mxu0
        %v2162 = vadd.f32 %v2050, %v2161
        %v2163 = vpop.f32.mrb[0].mxu0
        %2164 = vdwg.mxu0
        %v2165 = vadd.f32 %v2135, %v2138
        %v2166 = vadd.f32 %v2165, %v2143
        %v2167 = vadd.f32 %v2166, %v2146
        %v2168 = vadd.f32 %v2167, %v2151
        %v2169 = vadd.f32 %v2168, %v2154
        %v2170 = vadd.f32 %v2169, %v2159
        %v2171 = vadd.f32 %v2170, %v2162
        %v2172 = vrot.slane %v2171, 4
        %v2173 = vadd.f32 %v2171, %v2172
        %v2174 = vrot.slane %v2173, 2
        %v2175 = vadd.f32 %v2173, %v2174
        %v2176 = vrot.slane %v2175, 1
        %v2177 = vadd.f32 %v2175, %v2176
        %v2178 = vrcp.pop 64.0
        %v2179 = vmul.f32 %v2177, %v2178
        %v2180 = vpack.c.bf16 %v2179, %v2179
        %v2181 = vld [vmem:[%s7] sm:$0xf]
        %v2182 = vld [vmem:[%s7 + $0x4] sm:$0xf]
        %v2183 = vld [vmem:[%s7 + $0x8] sm:$0xf]
        %v2184 = vld [vmem:[%s7 + $0xc] sm:$0xf]
        %v2185 = vld [vmem:[%s7 + $0x10] sm:$0xf]
        %v2186 = vld [vmem:[%s7 + $0x14] sm:$0xf]
        %v2187 = vld [vmem:[%s7 + $0x18] sm:$0xf]
        %v2188 = vld [vmem:[%s7 + $0x1c] sm:$0xf]
        %v2189 = vld [vmem:[%s7 + $0x20] sm:$0xf]
        %v2190 = vld [vmem:[%s7 + $0x24] sm:$0xf]
        %v2191 = vld [vmem:[%s7 + $0x28] sm:$0xf]
        %v2192 = vld [vmem:[%s7 + $0x2c] sm:$0xf]
        %v2193 = vld [vmem:[%s7 + $0x30] sm:$0xf]
        %v2194 = vld [vmem:[%s7 + $0x34] sm:$0xf]
        %v2195 = vld [vmem:[%s7 + $0x38] sm:$0xf]
        %v2196 = vld [vmem:[%s7 + $0x3c] sm:$0xf]
        %v2213 = vunpack.c.l.b16 %v2181
        %v2214 = vunpack.c.l.b16 %v2182
        %v2215 = vunpack.c.l.b16 %v2183
        %v2216 = vunpack.c.l.b16 %v2184
        %v2217 = vunpack.c.l.b16 %v2185
        %v2218 = vunpack.c.l.b16 %v2186
        %v2219 = vunpack.c.l.b16 %v2187
        %v2220 = vunpack.c.l.b16 %v2188
        %v2221 = vunpack.c.l.b16 %v2189
        %v2222 = vunpack.c.l.b16 %v2190
        %v2223 = vunpack.c.l.b16 %v2191
        %v2224 = vunpack.c.l.b16 %v2192
        %v2225 = vunpack.c.l.b16 %v2193
        %v2226 = vunpack.c.l.b16 %v2194
        %v2227 = vunpack.c.l.b16 %v2195
        %v2228 = vunpack.c.l.b16 %v2196
        %v2229 = vpack.c.b16 %v2214, %v2213
        %v2230 = vpack.c.b16 %v2216, %v2215
        %v2231 = vpack.c.b16 %v2218, %v2217
        %v2232 = vpack.c.b16 %v2220, %v2219
        %v2233 = vpack.c.b16 %v2222, %v2221
        %v2234 = vpack.c.b16 %v2224, %v2223
        %v2235 = vpack.c.b16 %v2226, %v2225
        %v2236 = vpack.c.b16 %v2228, %v2227
        %2245 = vmatprep.subr.bf16.mxu0 0
        %2246 = vmatpush1.bf16.msra.mxu0 %v2229
        %2247 = vmatprep.subr.bf16.mxu0 0
        %2248 = vmatpush1.bf16.msra.mxu0 %v2230
        %2249 = vmatprep.subr.bf16.mxu0 0
        %2250 = vmatpush1.bf16.msra.mxu0 %v2231
        %2251 = vmatprep.subr.bf16.mxu0 0
        %2252 = vmatpush1.bf16.msra.mxu0 %v2232
        %2253 = vmatprep.subr.bf16.mxu0 0
        %2254 = vmatpush1.bf16.msra.mxu0 %v2233
        %2255 = vmatprep.subr.bf16.mxu0 0
        %2256 = vmatpush1.bf16.msra.mxu0 %v2234
        %2257 = vmatprep.subr.bf16.mxu0 0
        %2258 = vmatpush1.bf16.msra.mxu0 %v2235
        %2259 = vmatprep.subr.bf16.mxu0 0
        %2260 = vmatpush1.bf16.msra.mxu0 %v2236
        %2261 = vmatprep.subr.bf16.mxu0 0
        %2262 = vmatpush1.bf16.msra.mxu0 0
        %2263 = vmatprep.subr.bf16.mxu0 0
        %2264 = vmatpush1.bf16.msra.mxu0 0
        %2265 = vmatprep.subr.bf16.mxu0 0
        %2266 = vmatpush1.bf16.msra.mxu0 0
        %2267 = vmatprep.subr.bf16.mxu0 0
        %2268 = vmatpush1.bf16.msra.mxu0 0
        %2269 = vmatprep.subr.bf16.mxu0 0
        %2270 = vmatpush1.bf16.msra.mxu0 0
        %2271 = vmatprep.subr.bf16.mxu0 0
        %2272 = vmatpush1.bf16.msra.mxu0 0
        %2273 = vmatprep.subr.bf16.mxu0 0
        %2274 = vmatpush1.bf16.msra.mxu0 0
        %2275 = vmatprep.subr.bf16.mxu0 0
        %2276 = vmatpush1.bf16.msra.mxu0 0
        %2277 = vmatprep.mubr.bf16.mxu0 0
        %2278 = vmatmul.mubr.bf16.gmra.mrb[0].mxu0 %v2180
        %v2279 = vpop.f32.mrb[0].mxu0
        %v2280 = vadd.f32 0.0, %v2279
        %v2281 = vpop.f32.mrb[0].mxu0
        %v2282 = vpop.f32.mrb[0].mxu0
        %v2283 = vpop.f32.mrb[0].mxu0
        %2284 = vdwg.mxu0
        %v2285 = vmul.f32 %v2280, %v2280
        %v2286 = vmul.f32 %v2280, %v2285
        %v2287 = vmul.f32 %v2286, 0.044715
        %v2288 = vadd.f32 %v2280, %v2287
        %v2289 = vmul.f32 %v2288, 0.7978846
        %v2290 = vtanh.pop %v2289
        %v2291 = vadd.f32 %v2290, 1.0
        %v2292 = vmul.f32 %v2291, 0.5
        %v2293 = vmul.f32 %v2280, %v2292
        %v2294 = vpack.c.bf16 %v2293, %v2293
        %v2295 = vld [vmem:[%s8] sm:$0xf]
        %v2296 = vld [vmem:[%s8 + $0x4] sm:$0xf]
        %v2297 = vld [vmem:[%s8 + $0x8] sm:$0xf]
        %v2298 = vld [vmem:[%s8 + $0xc] sm:$0xf]
        %v2299 = vld [vmem:[%s8 + $0x10] sm:$0xf]
        %v2300 = vld [vmem:[%s8 + $0x14] sm:$0xf]
        %v2301 = vld [vmem:[%s8 + $0x18] sm:$0xf]
        %v2302 = vld [vmem:[%s8 + $0x1c] sm:$0xf]
        %v2303 = vld [vmem:[%s8 + $0x20] sm:$0xf]
        %v2304 = vld [vmem:[%s8 + $0x24] sm:$0xf]
        %v2305 = vld [vmem:[%s8 + $0x28] sm:$0xf]
        %v2306 = vld [vmem:[%s8 + $0x2c] sm:$0xf]
        %v2307 = vld [vmem:[%s8 + $0x30] sm:$0xf]
        %v2308 = vld [vmem:[%s8 + $0x34] sm:$0xf]
        %v2309 = vld [vmem:[%s8 + $0x38] sm:$0xf]
        %v2310 = vld [vmem:[%s8 + $0x3c] sm:$0xf]
        %v2327 = vunpack.c.l.b16 %v2295
        %v2328 = vunpack.c.l.b16 %v2296
        %v2329 = vunpack.c.l.b16 %v2297
        %v2330 = vunpack.c.l.b16 %v2298
        %v2331 = vunpack.c.l.b16 %v2299
        %v2332 = vunpack.c.l.b16 %v2300
        %v2333 = vunpack.c.l.b16 %v2301
        %v2334 = vunpack.c.l.b16 %v2302
        %v2335 = vunpack.c.l.b16 %v2303
        %v2336 = vunpack.c.l.b16 %v2304
        %v2337 = vunpack.c.l.b16 %v2305
        %v2338 = vunpack.c.l.b16 %v2306
        %v2339 = vunpack.c.l.b16 %v2307
        %v2340 = vunpack.c.l.b16 %v2308
        %v2341 = vunpack.c.l.b16 %v2309
        %v2342 = vunpack.c.l.b16 %v2310
        %v2343 = vpack.c.b16 %v2328, %v2327
        %v2344 = vpack.c.b16 %v2330, %v2329
        %v2345 = vpack.c.b16 %v2332, %v2331
        %v2346 = vpack.c.b16 %v2334, %v2333
        %v2347 = vpack.c.b16 %v2336, %v2335
        %v2348 = vpack.c.b16 %v2338, %v2337
        %v2349 = vpack.c.b16 %v2340, %v2339
        %v2350 = vpack.c.b16 %v2342, %v2341
        %2359 = vmatprep.subr.bf16.mxu0 0
        %2360 = vmatpush1.bf16.msra.mxu0 %v2343
        %2361 = vmatprep.subr.bf16.mxu0 0
        %2362 = vmatpush1.bf16.msra.mxu0 %v2344
        %2363 = vmatprep.subr.bf16.mxu0 0
        %2364 = vmatpush1.bf16.msra.mxu0 %v2345
        %2365 = vmatprep.subr.bf16.mxu0 0
        %2366 = vmatpush1.bf16.msra.mxu0 %v2346
        %2367 = vmatprep.subr.bf16.mxu0 0
        %2368 = vmatpush1.bf16.msra.mxu0 %v2347
        %2369 = vmatprep.subr.bf16.mxu0 0
        %2370 = vmatpush1.bf16.msra.mxu0 %v2348
        %2371 = vmatprep.subr.bf16.mxu0 0
        %2372 = vmatpush1.bf16.msra.mxu0 %v2349
        %2373 = vmatprep.subr.bf16.mxu0 0
        %2374 = vmatpush1.bf16.msra.mxu0 %v2350
        %2375 = vmatprep.subr.bf16.mxu0 0
        %2376 = vmatpush1.bf16.msra.mxu0 0
        %2377 = vmatprep.subr.bf16.mxu0 0
        %2378 = vmatpush1.bf16.msra.mxu0 0
        %2379 = vmatprep.subr.bf16.mxu0 0
        %2380 = vmatpush1.bf16.msra.mxu0 0
        %2381 = vmatprep.subr.bf16.mxu0 0
        %2382 = vmatpush1.bf16.msra.mxu0 0
        %2383 = vmatprep.subr.bf16.mxu0 0
        %2384 = vmatpush1.bf16.msra.mxu0 0
        %2385 = vmatprep.subr.bf16.mxu0 0
        %2386 = vmatpush1.bf16.msra.mxu0 0
        %2387 = vmatprep.subr.bf16.mxu0 0
        %2388 = vmatpush1.bf16.msra.mxu0 0
        %2389 = vmatprep.subr.bf16.mxu0 0
        %2390 = vmatpush1.bf16.msra.mxu0 0
        %2391 = vmatprep.mubr.bf16.mxu0 0
        %2392 = vmatmul.mubr.bf16.gmra.mrb[0].mxu0 %v2294
        %v2393 = vpop.f32.mrb[0].mxu0
        %v2394 = vadd.f32 0.0, %v2393
        %v2395 = vpop.f32.mrb[0].mxu0
        %v2396 = vpop.f32.mrb[0].mxu0
        %v2397 = vpop.f32.mrb[0].mxu0
        %2398 = vdwg.mxu0
        %v2399 = vxor.u32 %v2394, 2147483648
        %v2400 = vmul.f32 %v2399, 1.442695
        %v2401 = vpow.pop %v2400
        %v2402 = vadd.f32 %v2401, 1.0
        %v2403 = vrcp.pop %v2402
        %v2404 = vmul.f32 1.0, %v2403
        %v2405 = vld [vmem:[%s9] sm:$0xf]
        %v2406 = vld [vmem:[%s9 + $0x4] sm:$0xf]
        %v2407 = vld [vmem:[%s9 + $0x8] sm:$0xf]
        %v2408 = vld [vmem:[%s9 + $0xc] sm:$0xf]
        %v2409 = vld [vmem:[%s9 + $0x10] sm:$0xf]
        %v2410 = vld [vmem:[%s9 + $0x14] sm:$0xf]
        %v2411 = vld [vmem:[%s9 + $0x18] sm:$0xf]
        %v2412 = vld [vmem:[%s9 + $0x1c] sm:$0xf]
        %v2413 = vld [vmem:[%s9 + $0x20] sm:$0xf]
        %v2414 = vld [vmem:[%s9 + $0x24] sm:$0xf]
        %v2415 = vld [vmem:[%s9 + $0x28] sm:$0xf]
        %v2416 = vld [vmem:[%s9 + $0x2c] sm:$0xf]
        %v2417 = vld [vmem:[%s9 + $0x30] sm:$0xf]
        %v2418 = vld [vmem:[%s9 + $0x34] sm:$0xf]
        %v2419 = vld [vmem:[%s9 + $0x38] sm:$0xf]
        %v2420 = vld [vmem:[%s9 + $0x3c] sm:$0xf]
        %v2421 = vld [vmem:[%s10] sm:$0x1]
        %v2423 = vlaneseq
        %v2424 = vshrl.u32 %v2423, 7
        %v2425 = vsub.s32 0, %v2424
        %v2426 = vrot.slane %v2421, %v2425
        %v2444 = vunpack.c.l.b16 %v2405
        %v2445 = vunpack.c.l.b16 %v2406
        %v2446 = vunpack.c.l.b16 %v2407
        %v2447 = vunpack.c.l.b16 %v2408
        %v2448 = vunpack.c.l.b16 %v2409
        %v2449 = vunpack.c.l.b16 %v2410
        %v2450 = vunpack.c.l.b16 %v2411
        %v2451 = vunpack.c.l.b16 %v2412
        %v2452 = vunpack.c.l.b16 %v2413
        %v2453 = vunpack.c.l.b16 %v2414
        %v2454 = vunpack.c.l.b16 %v2415
        %v2455 = vunpack.c.l.b16 %v2416
        %v2456 = vunpack.c.l.b16 %v2417
        %v2457 = vunpack.c.l.b16 %v2418
        %v2458 = vunpack.c.l.b16 %v2419
        %v2459 = vunpack.c.l.b16 %v2420
        %v2460 = vpack.c.b16 %v2445, %v2444
        %v2461 = vpack.c.b16 %v2447, %v2446
        %v2462 = vpack.c.b16 %v2449, %v2448
        %v2463 = vpack.c.b16 %v2451, %v2450
        %v2464 = vpack.c.b16 %v2453, %v2452
        %v2465 = vpack.c.b16 %v2455, %v2454
        %v2466 = vpack.c.b16 %v2457, %v2456
        %v2467 = vpack.c.b16 %v2459, %v2458
        %2476 = vmatprep.subr.bf16.mxu0 0
        %2477 = vmatpush1.bf16.msra.mxu0 %v2460
        %2478 = vmatprep.subr.bf16.mxu0 0
        %2479 = vmatpush1.bf16.msra.mxu0 %v2461
        %2480 = vmatprep.subr.bf16.mxu0 0
        %2481 = vmatpush1.bf16.msra.mxu0 %v2462
        %2482 = vmatprep.subr.bf16.mxu0 0
        %2483 = vmatpush1.bf16.msra.mxu0 %v2463
        %2484 = vmatprep.subr.bf16.mxu0 0
        %2485 = vmatpush1.bf16.msra.mxu0 %v2464
        %2486 = vmatprep.subr.bf16.mxu0 0
        %2487 = vmatpush1.bf16.msra.mxu0 %v2465
        %2488 = vmatprep.subr.bf16.mxu0 0
        %2489 = vmatpush1.bf16.msra.mxu0 %v2466
        %2490 = vmatprep.subr.bf16.mxu0 0
        %2491 = vmatpush1.bf16.msra.mxu0 %v2467
        %2492 = vmatprep.subr.bf16.mxu0 0
        %2493 = vmatpush1.bf16.msra.mxu0 0
        %2494 = vmatprep.subr.bf16.mxu0 0
        %2495 = vmatpush1.bf16.msra.mxu0 0
        %2496 = vmatprep.subr.bf16.mxu0 0
        %2497 = vmatpush1.bf16.msra.mxu0 0
        %2498 = vmatprep.subr.bf16.mxu0 0
        %2499 = vmatpush1.bf16.msra.mxu0 0
        %2500 = vmatprep.subr.bf16.mxu0 0
        %2501 = vmatpush1.bf16.msra.mxu0 0
        %2502 = vmatprep.subr.bf16.mxu0 0
        %2503 = vmatpush1.bf16.msra.mxu0 0
        %2504 = vmatprep.subr.bf16.mxu0 0
        %2505 = vmatpush1.bf16.msra.mxu0 0
        %2506 = vmatprep.subr.bf16.mxu0 0
        %2507 = vmatpush1.bf16.msra.mxu0 0
        %2508 = vmatprep.mubr.bf16.mxu0 0
        %2509 = vmatmul.mubr.bf16.gmra.mrb[0].mxu0 %v433
        %v2510 = vpop.f32.mrb[0].mxu0
        %v2511 = vadd.f32 %v2426, %v2510
        %v2512 = vpop.f32.mrb[0].mxu0
        %v2513 = vpop.f32.mrb[0].mxu0
        %v2514 = vadd.f32 %v2426, %v2513
        %v2515 = vpop.f32.mrb[0].mxu0
        %2516 = vmatprep.mubr.bf16.mxu0 0
        %2517 = vmatmul.mubr.bf16.gmra.mrb[0].mxu0 %v434
        %v2518 = vpop.f32.mrb[0].mxu0
        %v2519 = vadd.f32 %v2426, %v2518
        %v2520 = vpop.f32.mrb[0].mxu0
        %v2521 = vpop.f32.mrb[0].mxu0
        %v2522 = vadd.f32 %v2426, %v2521
        %v2523 = vpop.f32.mrb[0].mxu0
        %2524 = vmatprep.mubr.bf16.mxu0 0
        %2525 = vmatmul.mubr.bf16.gmra.mrb[0].mxu0 %v435
        %v2526 = vpop.f32.mrb[0].mxu0
        %v2527 = vadd.f32 %v2426, %v2526
        %v2528 = vpop.f32.mrb[0].mxu0
        %v2529 = vpop.f32.mrb[0].mxu0
        %v2530 = vadd.f32 %v2426, %v2529
        %v2531 = vpop.f32.mrb[0].mxu0
        %2532 = vmatprep.mubr.bf16.mxu0 0
        %2533 = vmatmul.mubr.bf16.gmra.mrb[0].mxu0 %v436
        %v2534 = vpop.f32.mrb[0].mxu0
        %v2535 = vadd.f32 %v2426, %v2534
        %v2536 = vpop.f32.mrb[0].mxu0
        %v2537 = vpop.f32.mrb[0].mxu0
        %v2538 = vadd.f32 %v2426, %v2537
        %v2539 = vpop.f32.mrb[0].mxu0
        %2540 = vdwg.mxu0
        %v2541 = vlaneseq
        %v2542 = vshrl.u32 %v2541, 7
        %v2543 = vsub.s32 0, %v2542
        %v2544 = vrot.slane %v2404, %v2543
        %v2545 = vmul.f32 %v2135, %v2544
        %v2546 = vmul.f32 %v2138, %v2544
        %v2547 = vmul.f32 %v2143, %v2544
        %v2548 = vmul.f32 %v2146, %v2544
        %v2549 = vmul.f32 %v2151, %v2544
        %v2550 = vmul.f32 %v2154, %v2544
        %v2551 = vmul.f32 %v2159, %v2544
        %v2552 = vmul.f32 %v2162, %v2544
        %v2553 = vadd.f32 %v2135, %v2545
        %v2554 = vadd.f32 %v2138, %v2546
        %v2555 = vadd.f32 %v2143, %v2547
        %v2556 = vadd.f32 %v2146, %v2548
        %v2557 = vadd.f32 %v2151, %v2549
        %v2558 = vadd.f32 %v2154, %v2550
        %v2559 = vadd.f32 %v2159, %v2551
        %v2560 = vadd.f32 %v2162, %v2552
        %v2561 = vadd.f32 %v2553, %v2511
        %v2562 = vadd.f32 %v2554, %v2514
        %v2563 = vadd.f32 %v2555, %v2519
        %v2564 = vadd.f32 %v2556, %v2522
        %v2565 = vadd.f32 %v2557, %v2527
        %v2566 = vadd.f32 %v2558, %v2530
        %v2567 = vadd.f32 %v2559, %v2535
        %v2568 = vadd.f32 %v2560, %v2538
        %v2569 = vmax.f32 %v2561, 0.0
        %v2570 = vmax.f32 %v2562, 0.0
        %v2571 = vmax.f32 %v2563, 0.0
        %v2572 = vmax.f32 %v2564, 0.0
        %v2573 = vmax.f32 %v2565, 0.0
        %v2574 = vmax.f32 %v2566, 0.0
        %v2575 = vmax.f32 %v2567, 0.0
        %v2576 = vmax.f32 %v2568, 0.0
        %2577 = vst [vmem:[%s379] sm:$0xff] %v2569
        %2578 = vst [vmem:[%s379 + $0x8] sm:$0xff] %v2570
        %2579 = vst [vmem:[%s379 + $0x10] sm:$0xff] %v2571
        %2580 = vst [vmem:[%s379 + $0x18] sm:$0xff] %v2572
        %2581 = vst [vmem:[%s379 + $0x20] sm:$0xff] %v2573
        %2582 = vst [vmem:[%s379 + $0x28] sm:$0xff] %v2574
        %2583 = vst [vmem:[%s379 + $0x30] sm:$0xff] %v2575
        %2584 = vst [vmem:[%s379 + $0x38] sm:$0xff] %v2576
        %s2585 = sand.u32 %s269, 1
        %s2586 = scalar_lea.sflag [#allocation4], %s2585
        %s2587 = sand.u32 %s269, 1
        %s2588 = smul.addr %s2587, 64
        %s2589 = scalar_lea.vmem [#allocation3], %s2588
        // Predicated region
        $region65: #{bottleneck_forward.1} parent=63 // pred_check
          %p2590 = pneg %p279
        $region66: #{bottleneck_forward.1} parent=63 // pred_check_branch
          %2592 = sbr.rel (%p2590) target = $region68
        $region67: #{bottleneck_forward.1} parent=63 // pred_region
          %s2594 = ssub.s32 1024, 1024
          %2595 = vsyncadd %s2586, %s2594
          %s2596 = smul.addr %s25, 8
          %s2597 = smul.addr %s2596, 128
          %s2598 = scalar_lea.hbm %s11, %s2597
          %s2599 = sshll.u32 %s2589, 4
          %s2600 = int_to_ptr.vmem [resolvable:$true] %s2599
          %2605 = dma.vmem_to_hbm [thread:$0]  %s2600, 1024, %s2598, %s2586, 128, 128, 8
        $region68: #{bottleneck_forward.1} parent=63 // pred_fallthru
          _
      $region64: #{bottleneck_forward.1} parent=5 // pred_fallthru
        _
      %p2606 = scmp.le.s32.totalorder 2, %s20
      // Predicated region
      $region69: #{bottleneck_forward.1} parent=5 // pred_check
        %p2607 = pneg %p2606
      $region70: #{bottleneck_forward.1} parent=5 // pred_check_branch
        %2609 = sbr.rel (%p2607) target = $region72
      $region71: #{bottleneck_forward.1} parent=5 // pred_region
        %s2610 = ssub.s32 %s20, 2
        // Predicated region
        $region73: #{bottleneck_forward.1} parent=71 // pred_check
          %p2611 = pneg %p285
        $region74: #{bottleneck_forward.1} parent=71 // pred_check_branch
          %2613 = sbr.rel (%p2611) target = $region76
        $region75: #{bottleneck_forward.1} parent=71 // pred_region
          %s2614 = sand.u32 %s270, 1
          %s2615 = scalar_lea.sflag [#allocation4], %s2614
          %s2616 = sand.u32 %s270, 1
          %s2617 = smul.addr %s2616, 64
          %s2618 = scalar_lea.vmem [#allocation3], %s2617
          %2619 = dma.done %s2615, 1024
        $region76: #{bottleneck_forward.1} parent=71 // pred_fallthru
          _
      $region72: #{bottleneck_forward.1} parent=5 // pred_fallthru
        _
    $region6: #{bottleneck_forward.1} parent=1 // loop_footer
      %s24 = sadd.s32 1, %s20
    $region7: #{bottleneck_forward.1} parent=1 // loop_footer_branch
      %19 = sbr.rel target = $region3
    $region8: #{bottleneck_forward.1} parent=1 // loop_exit
      _
    %2620 = vsyncpa [#allocation4], 1
    %s2621 = scalar_lea.sflag [#allocation4], 1
    %2622 = vsyncpa %s2621, 1

</llo_original>
